<compile_context>
chip_gen: v6e
topology: v6e:2x2x1
jax: 0.10.0
libtpu: 0.0.40
codegen_flags: <defaults>
</compile_context>

<pallas_src>
import jax
import jax.numpy as jnp
from jax.experimental import pallas as pl
from jax.experimental.pallas import tpu as pltpu


def _round_up(x: int, m: int) -> int:
    return (x + m - 1) // m * m


def _cdiv(a: int, b: int) -> int:
    return -(-a // b)


def _vmem_budget_bytes() -> int:
    """Generation-aware VMEM budget (~25% headroom below physical capacity)."""
    try:
        cap = pltpu.get_tpu_info().vmem_capacity_bytes
    except Exception:
        cap = 64 * 1024 * 1024  # conservative fallback (v7x-sized)
    return int(cap * 3 // 4)


# Single-buffer pipeline mode for VMEM-resident (constant index_map) operands.
_SINGLE_BUFFER = pl.Buffered(1) if hasattr(pl, "Buffered") else None


# --------------------------------------------------------------------------
# Path A: resident bf16 weight, fused concat (S separate activation inputs).
# --------------------------------------------------------------------------
def _make_resident_kernel(states_num: int, hidden_dim: int, group: int):
    S, H = states_num, hidden_dim

    def kernel(*refs):
        # refs = (x_0, ..., x_{S-1}, w_ref, b_ref, o_ref)
        x_refs = refs[:S]
        w_ref, b_ref, o_ref = refs[S], refs[S + 1], refs[S + 2]

        # Accumulator initialized from the broadcast bias (saves one full-tile
        # VALU pass + zeros materialization per tile).
        acc = jnp.broadcast_to(b_ref[...], o_ref.shape).astype(jnp.float32)

        # Fold `group` states per MXU contraction (group > 1 only when H is a
        # multiple of 128, so the in-VMEM concat is lane-aligned).
        for s0 in range(0, S, group):
            g = min(group, S - s0)
            if g == 1:
                lhs = x_refs[s0][...].astype(jnp.bfloat16)
            else:
                lhs = jnp.concatenate(
                    [x_refs[s0 + t][...].astype(jnp.bfloat16) for t in range(g)],
                    axis=-1)
            acc = acc + jnp.dot(lhs, w_ref[s0 * H:(s0 + g) * H, :],
                                preferred_element_type=jnp.float32)

        o_ref[...] = acc.astype(o_ref.dtype)

    return kernel


# --------------------------------------------------------------------------
# Path B: K-streaming matmul (weight too large to keep resident, e.g. v7x at
# large hidden_dim).  Classic (M, N, K) grid, VMEM f32 accumulator scratch.
# --------------------------------------------------------------------------
def _stream_kernel(x_ref, w_ref, b_ref, o_ref, acc_ref):
    k = pl.program_id(2)

    @pl.when(k == 0)
    def _init():
        acc_ref[...] = jnp.broadcast_to(b_ref[...], acc_ref.shape).astype(jnp.float32)

    acc_ref[...] += jnp.dot(x_ref[...], w_ref[...],
                            preferred_element_type=jnp.float32)

    @pl.when(k == pl.num_programs(2) - 1)
    def _finalize():
        o_ref[...] = acc_ref[...].astype(o_ref.dtype)


def fusion_project(x_list, weight_kn, bias_pad, out_dim, *, force_stream=False):
    """x_list:    S tensors of shape (M, H), f32.
    weight_kn: (S*H, Np) bf16 (Np = out_dim padded to a multiple of 128).
    bias_pad:  (1, Np) f32.
    Returns (M, out_dim) f32."""
    S = len(x_list)
    K, Np = weight_kn.shape
    H = x_list[0].shape[1]
    assert K == S * H, (K, S, H)
    M = x_list[0].shape[0]

    # ---- tile sizes -------------------------------------------------------
    # N tile <= 256 keeps the f32 register accumulator bounded (vreg pressure).
    if Np <= 256:
        tn = Np
    else:
        tn = 256 if Np % 256 == 0 else 128
    n_n = Np // tn

    # M tile: 8-aligned, capped at 256, and split so the (parallel) M axis has
    # at least 2 steps -> both v7x TensorCores get work even at decode sizes.
    if M <= 8:
        tm = 8
    else:
        tm = min(256, _round_up(_cdiv(M, 2), 8))
    m_pad = _round_up(M, tm)
    if m_pad != M:
        x_list = [jnp.pad(x, ((0, m_pad - M), (0, 0))) for x in x_list]
    n_m = m_pad // tm

    cost = pl.CostEstimate(
        flops=2 * m_pad * K * Np,
        transcendentals=0,
        bytes_accessed=4 * m_pad * K + 2 * K * Np + 4 * m_pad * Np + 4 * Np,
    )

    vmem_budget = _vmem_budget_bytes()

    # Resident-path VMEM estimate: bf16 weight SINGLE-buffered, f32 activation
    # tiles double-buffered, f32 output tiles double-buffered, + headroom.
    est_resident = (2 * K * tn                # weight, 1 buffer (bf16)
                    + 4 * tn                  # bias, 1 buffer (f32)
                    + 2 * 4 * S * tm * H      # activations, 2 buffers (f32)
                    + 2 * 4 * tm * tn         # output, 2 buffers (f32)
                    + (2 << 20))
    use_resident = (not force_stream) and est_resident <= vmem_budget

    if use_resident:
        # Fold states so each contraction has depth >= 256 when the chunks are
        # lane-aligned; otherwise (small/non-aligned H) keep per-state dots
        # (kernel is HBM-bound there, so MXU fill is not the binding unit).
        group = _cdiv(256, H) if (H % 128 == 0) else 1
        group = max(1, min(S, group))

        def _resident_spec(shape, index_map):
            return pl.BlockSpec(shape, index_map, pipeline_mode=_SINGLE_BUFFER)

        in_specs = (
            [pl.BlockSpec((tm, H), lambda j, i: (i, 0)) for _ in range(S)]
            + [_resident_spec((K, tn), lambda j, i: (0, j)),    # bf16 weight slab
               _resident_spec((1, tn), lambda j, i: (0, j))]    # bias
        )
        out_specs = pl.BlockSpec((tm, tn), lambda j, i: (i, j))  # lane-dense

        vmem_limit = int(min(max(est_resident + (4 << 20), 16 << 20), vmem_budget))

        out = pl.pallas_call(
            _make_resident_kernel(S, H, group),
            out_shape=jax.ShapeDtypeStruct((m_pad, Np), jnp.float32),
            grid_spec=pltpu.PrefetchScalarGridSpec(
                num_scalar_prefetch=0,
                grid=(n_n, n_m),                 # N outer, M inner
                in_specs=in_specs,
                out_specs=out_specs,
            ),
            compiler_params=pltpu.CompilerParams(
                dimension_semantics=("parallel", "parallel"),
                vmem_limit_bytes=vmem_limit,
            ),
            cost_estimate=cost,
        )(*x_list, weight_kn, bias_pad)

    else:
        # K-streaming path: pack the LHS to one big-K bf16 tensor (fuses with
        # the bf16 cast in a single XLA pass); stream (tk, tn) weight slices.
        x_cat = jnp.concatenate([x.astype(jnp.bfloat16) for x in x_list], axis=-1)
        k_pad = _round_up(K, 256)
        tk = 256
        if k_pad != K:
            x_cat = jnp.pad(x_cat, ((0, 0), (0, k_pad - K)))
            weight_kn = jnp.pad(weight_kn, ((0, k_pad - K), (0, 0)))
        n_k = k_pad // tk

        in_specs = [
            pl.BlockSpec((tm, tk), lambda i, j, k: (i, k)),
            pl.BlockSpec((tk, tn), lambda i, j, k: (k, j)),
            pl.BlockSpec((1, tn), lambda i, j, k: (0, j)),
        ]
        out_specs = pl.BlockSpec((tm, tn), lambda i, j, k: (i, j))

        est_stream = (2 * 2 * tm * tk + 2 * 2 * tk * tn + 4 * tn
                      + 2 * 4 * tm * tn + 4 * tm * tn + (2 << 20))
        vmem_limit = int(min(max(est_stream + (4 << 20), 16 << 20), vmem_budget))

        out = pl.pallas_call(
            _stream_kernel,
            out_shape=jax.ShapeDtypeStruct((m_pad, Np), jnp.float32),
            grid_spec=pltpu.PrefetchScalarGridSpec(
                num_scalar_prefetch=0,
                grid=(n_m, n_n, n_k),            # reduction axis last
                in_specs=in_specs,
                out_specs=out_specs,
                scratch_shapes=[pltpu.VMEM((tm, tn), jnp.float32)],
            ),
            compiler_params=pltpu.CompilerParams(
                dimension_semantics=("parallel", "parallel", "arbitrary"),
                vmem_limit_bytes=vmem_limit,
            ),
            cost_estimate=cost,
        )(x_cat, weight_kn, bias_pad)

    return out[:M, :out_dim]


class FusionModuleJax:
    """JAX/Pallas port of FusionModule(hidden_dim, states_num)."""

    def __init__(self, hidden_dim: int, states_num: int = 13, key=None):
        self.base_dim = hidden_dim
        self.states_num = states_num
        in_features = states_num * hidden_dim
        if key is None:
            key = jax.random.PRNGKey(0)
        kw, kb = jax.random.split(key)
        # PyTorch nn.Linear default init: U(-1/sqrt(in), 1/sqrt(in)).
        bound = 1.0 / float(in_features) ** 0.5
        # Transposed weight (K, N) so the kernel computes x @ W^T directly.
        self.weight_t = jax.random.uniform(
            kw, (in_features, hidden_dim), jnp.float32, -bound, bound)
        self.bias = jax.random.uniform(
            kb, (1, hidden_dim), jnp.float32, -bound, bound)

        # One-time kernel-side parameter prep: pad N to a multiple of 128
        # (lane-dense stores) and cast the weight to bf16 (resident slab).
        n_pad = _round_up(hidden_dim, 128)
        w_pad = jnp.pad(self.weight_t, ((0, 0), (0, n_pad - hidden_dim)))
        self.weight_kn = w_pad.astype(jnp.bfloat16)                       # (S*H, Np)
        self.bias_pad = jnp.pad(self.bias, ((0, 0), (0, n_pad - hidden_dim)))  # (1, Np)

    def __call__(self, hidden_states, *, force_stream=False):
        lead = hidden_states[0].shape[:-1]
        h = self.base_dim
        # No jnp.concatenate on the fast path: the concat is fused into the kernel.
        x_list = [hs.reshape(-1, h) for hs in hidden_states]
        y2d = fusion_project(x_list, self.weight_kn, self.bias_pad, h,
                             force_stream=force_stream)
        return y2d.reshape(*lead, h)


if __name__ == "__main__":
    hidden_dim = 32
    states_num = 13
    batch, seq = 2, 8

    key = jax.random.PRNGKey(0)
    k_mod, k_in = jax.random.split(key)

    module = FusionModuleJax(hidden_dim, states_num, key=k_mod)

    in_keys = jax.random.split(k_in, states_num)
    hidden_states = [
        jax.random.normal(k, (batch, seq, hidden_dim), jnp.float32)
        for k in in_keys
    ]

    # Pure-JAX reference (unfused concat + f32 matmul).
    x = jnp.concatenate(hidden_states, axis=-1)
    ref = x @ module.weight_t + module.bias[0]

    # Path A: resident bf16 weight, fused concat.
    out = jax.block_until_ready(module(hidden_states))
    assert out.shape == (batch, seq, hidden_dim), out.shape
    err_a = float(jnp.max(jnp.abs(out - ref)))
    assert jnp.allclose(out, ref, atol=3e-2, rtol=3e-2), err_a

    # Path B: K-streaming fallback (exercised here explicitly so the
    # large-weight / v7x path is also verified).
    out_stream = jax.block_until_ready(module(hidden_states, force_stream=True))
    err_b = float(jnp.max(jnp.abs(out_stream - ref)))
    assert jnp.allclose(out_stream, ref, atol=3e-2, rtol=3e-2), err_b

    print("KERNEL_OK")
</pallas_src>

<mosaic_0001>
module attributes {stable_mosaic.version = 11 : i64} {
  func.func @kernel(%arg0: i32, %arg1: i32, %arg2: memref<8x32xf32, #tpu.memory_space<vmem>>, %arg3: memref<8x32xf32, #tpu.memory_space<vmem>>, %arg4: memref<8x32xf32, #tpu.memory_space<vmem>>, %arg5: memref<8x32xf32, #tpu.memory_space<vmem>>, %arg6: memref<8x32xf32, #tpu.memory_space<vmem>>, %arg7: memref<8x32xf32, #tpu.memory_space<vmem>>, %arg8: memref<8x32xf32, #tpu.memory_space<vmem>>, %arg9: memref<8x32xf32, #tpu.memory_space<vmem>>, %arg10: memref<8x32xf32, #tpu.memory_space<vmem>>, %arg11: memref<8x32xf32, #tpu.memory_space<vmem>>, %arg12: memref<8x32xf32, #tpu.memory_space<vmem>>, %arg13: memref<8x32xf32, #tpu.memory_space<vmem>>, %arg14: memref<8x32xf32, #tpu.memory_space<vmem>>, %arg15: memref<416x128xbf16, #tpu.memory_space<vmem>>, %arg16: memref<1x128xf32, #tpu.memory_space<vmem>>, %arg17: memref<8x128xf32, #tpu.memory_space<vmem>>) attributes {dimension_semantics = [#tpu.dimension_semantics<parallel>, #tpu.dimension_semantics<parallel>], iteration_bounds = array<i64: 1, 2>, scalar_prefetch = 0 : i64, scratch_operands = 0 : i64, tpu.core_type = #tpu.core_type<tc>, window_params = [{transform_indices = @transform_0, window_bounds = array<i64: 8, 32>}, {transform_indices = @transform_1, window_bounds = array<i64: 8, 32>}, {transform_indices = @transform_2, window_bounds = array<i64: 8, 32>}, {transform_indices = @transform_3, window_bounds = array<i64: 8, 32>}, {transform_indices = @transform_4, window_bounds = array<i64: 8, 32>}, {transform_indices = @transform_5, window_bounds = array<i64: 8, 32>}, {transform_indices = @transform_6, window_bounds = array<i64: 8, 32>}, {transform_indices = @transform_7, window_bounds = array<i64: 8, 32>}, {transform_indices = @transform_8, window_bounds = array<i64: 8, 32>}, {transform_indices = @transform_9, window_bounds = array<i64: 8, 32>}, {transform_indices = @transform_10, window_bounds = array<i64: 8, 32>}, {transform_indices = @transform_11, window_bounds = array<i64: 8, 32>}, {transform_indices = @transform_12, window_bounds = array<i64: 8, 32>}, {pipeline_mode = #tpu.pipeline_mode<synchronous>, transform_indices = @transform_13, window_bounds = array<i64: 416, 128>}, {pipeline_mode = #tpu.pipeline_mode<synchronous>, transform_indices = @transform_14, window_bounds = array<i64: 1, 128>}, {transform_indices = @transform_15, window_bounds = array<i64: 8, 128>}]} {
    %c0 = arith.constant 0 : index
    %c0_0 = arith.constant 0 : index
    %0 = vector.load %arg16[%c0, %c0_0] : memref<1x128xf32, #tpu.memory_space<vmem>>, vector<1x128xf32>
    %1 = vector.shape_cast %0 : vector<1x128xf32> to vector<1x128xf32>
    %2 = vector.broadcast %1 : vector<1x128xf32> to vector<8x128xf32>
    %c0_1 = arith.constant 0 : index
    %c0_2 = arith.constant 0 : index
    %3 = vector.load %arg2[%c0_1, %c0_2] : memref<8x32xf32, #tpu.memory_space<vmem>>, vector<8x32xf32>
    %4 = arith.truncf %3 : vector<8x32xf32> to vector<8x32xbf16>
    %c0_3 = arith.constant 0 : index
    %c0_4 = arith.constant 0 : index
    %5 = vector.load %arg15[%c0_3, %c0_4] : memref<416x128xbf16, #tpu.memory_space<vmem>>, vector<32x128xbf16>
    %cst = arith.constant dense<0.000000e+00> : vector<8x128xf32>
    %6 = tpu.matmul %4, %5, %cst {dimension_numbers = #tpu.dot_dimension_numbers<[1], [0], [0], [1], [0, 0, 1, 1], [], []>} : vector<8x32xbf16>, vector<32x128xbf16>, vector<8x128xf32> -> vector<8x128xf32>
    %7 = arith.addf %2, %6 : vector<8x128xf32>
    %c0_5 = arith.constant 0 : index
    %c0_6 = arith.constant 0 : index
    %8 = vector.load %arg3[%c0_5, %c0_6] : memref<8x32xf32, #tpu.memory_space<vmem>>, vector<8x32xf32>
    %9 = arith.truncf %8 : vector<8x32xf32> to vector<8x32xbf16>
    %c32 = arith.constant 32 : index
    %c0_7 = arith.constant 0 : index
    %10 = vector.load %arg15[%c32, %c0_7] : memref<416x128xbf16, #tpu.memory_space<vmem>>, vector<32x128xbf16>
    %cst_8 = arith.constant dense<0.000000e+00> : vector<8x128xf32>
    %11 = tpu.matmul %9, %10, %cst_8 {dimension_numbers = #tpu.dot_dimension_numbers<[1], [0], [0], [1], [0, 0, 1, 1], [], []>} : vector<8x32xbf16>, vector<32x128xbf16>, vector<8x128xf32> -> vector<8x128xf32>
    %12 = arith.addf %7, %11 : vector<8x128xf32>
    %c0_9 = arith.constant 0 : index
    %c0_10 = arith.constant 0 : index
    %13 = vector.load %arg4[%c0_9, %c0_10] : memref<8x32xf32, #tpu.memory_space<vmem>>, vector<8x32xf32>
    %14 = arith.truncf %13 : vector<8x32xf32> to vector<8x32xbf16>
    %c64 = arith.constant 64 : index
    %c0_11 = arith.constant 0 : index
    %15 = vector.load %arg15[%c64, %c0_11] : memref<416x128xbf16, #tpu.memory_space<vmem>>, vector<32x128xbf16>
    %cst_12 = arith.constant dense<0.000000e+00> : vector<8x128xf32>
    %16 = tpu.matmul %14, %15, %cst_12 {dimension_numbers = #tpu.dot_dimension_numbers<[1], [0], [0], [1], [0, 0, 1, 1], [], []>} : vector<8x32xbf16>, vector<32x128xbf16>, vector<8x128xf32> -> vector<8x128xf32>
    %17 = arith.addf %12, %16 : vector<8x128xf32>
    %c0_13 = arith.constant 0 : index
    %c0_14 = arith.constant 0 : index
    %18 = vector.load %arg5[%c0_13, %c0_14] : memref<8x32xf32, #tpu.memory_space<vmem>>, vector<8x32xf32>
    %19 = arith.truncf %18 : vector<8x32xf32> to vector<8x32xbf16>
    %c96 = arith.constant 96 : index
    %c0_15 = arith.constant 0 : index
    %20 = vector.load %arg15[%c96, %c0_15] : memref<416x128xbf16, #tpu.memory_space<vmem>>, vector<32x128xbf16>
    %cst_16 = arith.constant dense<0.000000e+00> : vector<8x128xf32>
    %21 = tpu.matmul %19, %20, %cst_16 {dimension_numbers = #tpu.dot_dimension_numbers<[1], [0], [0], [1], [0, 0, 1, 1], [], []>} : vector<8x32xbf16>, vector<32x128xbf16>, vector<8x128xf32> -> vector<8x128xf32>
    %22 = arith.addf %17, %21 : vector<8x128xf32>
    %c0_17 = arith.constant 0 : index
    %c0_18 = arith.constant 0 : index
    %23 = vector.load %arg6[%c0_17, %c0_18] : memref<8x32xf32, #tpu.memory_space<vmem>>, vector<8x32xf32>
    %24 = arith.truncf %23 : vector<8x32xf32> to vector<8x32xbf16>
    %c128 = arith.constant 128 : index
    %c0_19 = arith.constant 0 : index
    %25 = vector.load %arg15[%c128, %c0_19] : memref<416x128xbf16, #tpu.memory_space<vmem>>, vector<32x128xbf16>
    %cst_20 = arith.constant dense<0.000000e+00> : vector<8x128xf32>
    %26 = tpu.matmul %24, %25, %cst_20 {dimension_numbers = #tpu.dot_dimension_numbers<[1], [0], [0], [1], [0, 0, 1, 1], [], []>} : vector<8x32xbf16>, vector<32x128xbf16>, vector<8x128xf32> -> vector<8x128xf32>
    %27 = arith.addf %22, %26 : vector<8x128xf32>
    %c0_21 = arith.constant 0 : index
    %c0_22 = arith.constant 0 : index
    %28 = vector.load %arg7[%c0_21, %c0_22] : memref<8x32xf32, #tpu.memory_space<vmem>>, vector<8x32xf32>
    %29 = arith.truncf %28 : vector<8x32xf32> to vector<8x32xbf16>
    %c160 = arith.constant 160 : index
    %c0_23 = arith.constant 0 : index
    %30 = vector.load %arg15[%c160, %c0_23] : memref<416x128xbf16, #tpu.memory_space<vmem>>, vector<32x128xbf16>
    %cst_24 = arith.constant dense<0.000000e+00> : vector<8x128xf32>
    %31 = tpu.matmul %29, %30, %cst_24 {dimension_numbers = #tpu.dot_dimension_numbers<[1], [0], [0], [1], [0, 0, 1, 1], [], []>} : vector<8x32xbf16>, vector<32x128xbf16>, vector<8x128xf32> -> vector<8x128xf32>
    %32 = arith.addf %27, %31 : vector<8x128xf32>
    %c0_25 = arith.constant 0 : index
    %c0_26 = arith.constant 0 : index
    %33 = vector.load %arg8[%c0_25, %c0_26] : memref<8x32xf32, #tpu.memory_space<vmem>>, vector<8x32xf32>
    %34 = arith.truncf %33 : vector<8x32xf32> to vector<8x32xbf16>
    %c192 = arith.constant 192 : index
    %c0_27 = arith.constant 0 : index
    %35 = vector.load %arg15[%c192, %c0_27] : memref<416x128xbf16, #tpu.memory_space<vmem>>, vector<32x128xbf16>
    %cst_28 = arith.constant dense<0.000000e+00> : vector<8x128xf32>
    %36 = tpu.matmul %34, %35, %cst_28 {dimension_numbers = #tpu.dot_dimension_numbers<[1], [0], [0], [1], [0, 0, 1, 1], [], []>} : vector<8x32xbf16>, vector<32x128xbf16>, vector<8x128xf32> -> vector<8x128xf32>
    %37 = arith.addf %32, %36 : vector<8x128xf32>
    %c0_29 = arith.constant 0 : index
    %c0_30 = arith.constant 0 : index
    %38 = vector.load %arg9[%c0_29, %c0_30] : memref<8x32xf32, #tpu.memory_space<vmem>>, vector<8x32xf32>
    %39 = arith.truncf %38 : vector<8x32xf32> to vector<8x32xbf16>
    %c224 = arith.constant 224 : index
    %c0_31 = arith.constant 0 : index
    %40 = vector.load %arg15[%c224, %c0_31] : memref<416x128xbf16, #tpu.memory_space<vmem>>, vector<32x128xbf16>
    %cst_32 = arith.constant dense<0.000000e+00> : vector<8x128xf32>
    %41 = tpu.matmul %39, %40, %cst_32 {dimension_numbers = #tpu.dot_dimension_numbers<[1], [0], [0], [1], [0, 0, 1, 1], [], []>} : vector<8x32xbf16>, vector<32x128xbf16>, vector<8x128xf32> -> vector<8x128xf32>
    %42 = arith.addf %37, %41 : vector<8x128xf32>
    %c0_33 = arith.constant 0 : index
    %c0_34 = arith.constant 0 : index
    %43 = vector.load %arg10[%c0_33, %c0_34] : memref<8x32xf32, #tpu.memory_space<vmem>>, vector<8x32xf32>
    %44 = arith.truncf %43 : vector<8x32xf32> to vector<8x32xbf16>
    %c256 = arith.constant 256 : index
    %c0_35 = arith.constant 0 : index
    %45 = vector.load %arg15[%c256, %c0_35] : memref<416x128xbf16, #tpu.memory_space<vmem>>, vector<32x128xbf16>
    %cst_36 = arith.constant dense<0.000000e+00> : vector<8x128xf32>
    %46 = tpu.matmul %44, %45, %cst_36 {dimension_numbers = #tpu.dot_dimension_numbers<[1], [0], [0], [1], [0, 0, 1, 1], [], []>} : vector<8x32xbf16>, vector<32x128xbf16>, vector<8x128xf32> -> vector<8x128xf32>
    %47 = arith.addf %42, %46 : vector<8x128xf32>
    %c0_37 = arith.constant 0 : index
    %c0_38 = arith.constant 0 : index
    %48 = vector.load %arg11[%c0_37, %c0_38] : memref<8x32xf32, #tpu.memory_space<vmem>>, vector<8x32xf32>
    %49 = arith.truncf %48 : vector<8x32xf32> to vector<8x32xbf16>
    %c288 = arith.constant 288 : index
    %c0_39 = arith.constant 0 : index
    %50 = vector.load %arg15[%c288, %c0_39] : memref<416x128xbf16, #tpu.memory_space<vmem>>, vector<32x128xbf16>
    %cst_40 = arith.constant dense<0.000000e+00> : vector<8x128xf32>
    %51 = tpu.matmul %49, %50, %cst_40 {dimension_numbers = #tpu.dot_dimension_numbers<[1], [0], [0], [1], [0, 0, 1, 1], [], []>} : vector<8x32xbf16>, vector<32x128xbf16>, vector<8x128xf32> -> vector<8x128xf32>
    %52 = arith.addf %47, %51 : vector<8x128xf32>
    %c0_41 = arith.constant 0 : index
    %c0_42 = arith.constant 0 : index
    %53 = vector.load %arg12[%c0_41, %c0_42] : memref<8x32xf32, #tpu.memory_space<vmem>>, vector<8x32xf32>
    %54 = arith.truncf %53 : vector<8x32xf32> to vector<8x32xbf16>
    %c320 = arith.constant 320 : index
    %c0_43 = arith.constant 0 : index
    %55 = vector.load %arg15[%c320, %c0_43] : memref<416x128xbf16, #tpu.memory_space<vmem>>, vector<32x128xbf16>
    %cst_44 = arith.constant dense<0.000000e+00> : vector<8x128xf32>
    %56 = tpu.matmul %54, %55, %cst_44 {dimension_numbers = #tpu.dot_dimension_numbers<[1], [0], [0], [1], [0, 0, 1, 1], [], []>} : vector<8x32xbf16>, vector<32x128xbf16>, vector<8x128xf32> -> vector<8x128xf32>
    %57 = arith.addf %52, %56 : vector<8x128xf32>
    %c0_45 = arith.constant 0 : index
    %c0_46 = arith.constant 0 : index
    %58 = vector.load %arg13[%c0_45, %c0_46] : memref<8x32xf32, #tpu.memory_space<vmem>>, vector<8x32xf32>
    %59 = arith.truncf %58 : vector<8x32xf32> to vector<8x32xbf16>
    %c352 = arith.constant 352 : index
    %c0_47 = arith.constant 0 : index
    %60 = vector.load %arg15[%c352, %c0_47] : memref<416x128xbf16, #tpu.memory_space<vmem>>, vector<32x128xbf16>
    %cst_48 = arith.constant dense<0.000000e+00> : vector<8x128xf32>
    %61 = tpu.matmul %59, %60, %cst_48 {dimension_numbers = #tpu.dot_dimension_numbers<[1], [0], [0], [1], [0, 0, 1, 1], [], []>} : vector<8x32xbf16>, vector<32x128xbf16>, vector<8x128xf32> -> vector<8x128xf32>
    %62 = arith.addf %57, %61 : vector<8x128xf32>
    %c0_49 = arith.constant 0 : index
    %c0_50 = arith.constant 0 : index
    %63 = vector.load %arg14[%c0_49, %c0_50] : memref<8x32xf32, #tpu.memory_space<vmem>>, vector<8x32xf32>
    %64 = arith.truncf %63 : vector<8x32xf32> to vector<8x32xbf16>
    %c384 = arith.constant 384 : index
    %c0_51 = arith.constant 0 : index
    %65 = vector.load %arg15[%c384, %c0_51] : memref<416x128xbf16, #tpu.memory_space<vmem>>, vector<32x128xbf16>
    %cst_52 = arith.constant dense<0.000000e+00> : vector<8x128xf32>
    %66 = tpu.matmul %64, %65, %cst_52 {dimension_numbers = #tpu.dot_dimension_numbers<[1], [0], [0], [1], [0, 0, 1, 1], [], []>} : vector<8x32xbf16>, vector<32x128xbf16>, vector<8x128xf32> -> vector<8x128xf32>
    %67 = arith.addf %62, %66 : vector<8x128xf32>
    %c0_53 = arith.constant 0 : index
    %c0_54 = arith.constant 0 : index
    %68 = vector.load %arg17[%c0_53, %c0_54] : memref<8x128xf32, #tpu.memory_space<vmem>>, vector<8x128xf32>
    tpu.vector_store %arg17[%c0_53, %c0_54], %67 {strides = array<i32>} : memref<8x128xf32, #tpu.memory_space<vmem>>, vector<8x128xf32>,
    return
  }
  func.func @transform_0(%arg0: i32, %arg1: i32) -> (i32, i32) {
    %c0_i32 = arith.constant 0 : i32
    %c0_i32_0 = arith.constant 0 : i32
    return %arg1, %c0_i32 : i32, i32
  }
  func.func @transform_1(%arg0: i32, %arg1: i32) -> (i32, i32) {
    %c0_i32 = arith.constant 0 : i32
    %c0_i32_0 = arith.constant 0 : i32
    return %arg1, %c0_i32 : i32, i32
  }
  func.func @transform_2(%arg0: i32, %arg1: i32) -> (i32, i32) {
    %c0_i32 = arith.constant 0 : i32
    %c0_i32_0 = arith.constant 0 : i32
    return %arg1, %c0_i32 : i32, i32
  }
  func.func @transform_3(%arg0: i32, %arg1: i32) -> (i32, i32) {
    %c0_i32 = arith.constant 0 : i32
    %c0_i32_0 = arith.constant 0 : i32
    return %arg1, %c0_i32 : i32, i32
  }
  func.func @transform_4(%arg0: i32, %arg1: i32) -> (i32, i32) {
    %c0_i32 = arith.constant 0 : i32
    %c0_i32_0 = arith.constant 0 : i32
    return %arg1, %c0_i32 : i32, i32
  }
  func.func @transform_5(%arg0: i32, %arg1: i32) -> (i32, i32) {
    %c0_i32 = arith.constant 0 : i32
    %c0_i32_0 = arith.constant 0 : i32
    return %arg1, %c0_i32 : i32, i32
  }
  func.func @transform_6(%arg0: i32, %arg1: i32) -> (i32, i32) {
    %c0_i32 = arith.constant 0 : i32
    %c0_i32_0 = arith.constant 0 : i32
    return %arg1, %c0_i32 : i32, i32
  }
  func.func @transform_7(%arg0: i32, %arg1: i32) -> (i32, i32) {
    %c0_i32 = arith.constant 0 : i32
    %c0_i32_0 = arith.constant 0 : i32
    return %arg1, %c0_i32 : i32, i32
  }
  func.func @transform_8(%arg0: i32, %arg1: i32) -> (i32, i32) {
    %c0_i32 = arith.constant 0 : i32
    %c0_i32_0 = arith.constant 0 : i32
    return %arg1, %c0_i32 : i32, i32
  }
  func.func @transform_9(%arg0: i32, %arg1: i32) -> (i32, i32) {
    %c0_i32 = arith.constant 0 : i32
    %c0_i32_0 = arith.constant 0 : i32
    return %arg1, %c0_i32 : i32, i32
  }
  func.func @transform_10(%arg0: i32, %arg1: i32) -> (i32, i32) {
    %c0_i32 = arith.constant 0 : i32
    %c0_i32_0 = arith.constant 0 : i32
    return %arg1, %c0_i32 : i32, i32
  }
  func.func @transform_11(%arg0: i32, %arg1: i32) -> (i32, i32) {
    %c0_i32 = arith.constant 0 : i32
    %c0_i32_0 = arith.constant 0 : i32
    return %arg1, %c0_i32 : i32, i32
  }
  func.func @transform_12(%arg0: i32, %arg1: i32) -> (i32, i32) {
    %c0_i32 = arith.constant 0 : i32
    %c0_i32_0 = arith.constant 0 : i32
    return %arg1, %c0_i32 : i32, i32
  }
  func.func @transform_13(%arg0: i32, %arg1: i32) -> (i32, i32) {
    %c0_i32 = arith.constant 0 : i32
    %c0_i32_0 = arith.constant 0 : i32
    return %c0_i32, %arg0 : i32, i32
  }
  func.func @transform_14(%arg0: i32, %arg1: i32) -> (i32, i32) {
    %c0_i32 = arith.constant 0 : i32
    %c0_i32_0 = arith.constant 0 : i32
    return %c0_i32, %arg0 : i32, i32
  }
  func.func @transform_15(%arg0: i32, %arg1: i32) -> (i32, i32) {
    %c0_i32 = arith.constant 0 : i32
    return %arg1, %arg0 : i32, i32
  }
}

</mosaic_0001>

<llo_original>
// kernel: tpu_custom_call.1
$region0: #{tpu_custom_call.1}
  #allocation0 [shape = 'u32[]', space=smem, size = 0x4, offset = 0x4, fixed_abs, tag = 'smem constant byte address 0x4 - core index']
  #allocation1 [shape = 'u32[144,128]{1,0:T(1,128)}', space=vmem, size = 0x12000, scoped, tag = 'internal scratch']
  %s0 = inlined_call_operand.hbm [shape: f32[16,32], index: 0, kind: input, shape index: {}]
  %s1 = inlined_call_operand.hbm [shape: f32[16,32], index: 1, kind: input, shape index: {}]
  %s2 = inlined_call_operand.hbm [shape: f32[16,32], index: 2, kind: input, shape index: {}]
  %s3 = inlined_call_operand.hbm [shape: f32[16,32], index: 3, kind: input, shape index: {}]
  %s4 = inlined_call_operand.hbm [shape: f32[16,32], index: 4, kind: input, shape index: {}]
  %s5 = inlined_call_operand.hbm [shape: f32[16,32], index: 5, kind: input, shape index: {}]
  %s6 = inlined_call_operand.hbm [shape: f32[16,32], index: 6, kind: input, shape index: {}]
  %s7 = inlined_call_operand.hbm [shape: f32[16,32], index: 7, kind: input, shape index: {}]
  %s8 = inlined_call_operand.hbm [shape: f32[16,32], index: 8, kind: input, shape index: {}]
  %s9 = inlined_call_operand.vmem [shape: f32[16,32], index: 9, kind: input, shape index: {}]
  %s10 = inlined_call_operand.hbm [shape: f32[16,32], index: 10, kind: input, shape index: {}]
  %s11 = inlined_call_operand.hbm [shape: f32[16,32], index: 11, kind: input, shape index: {}]
  %s12 = inlined_call_operand.hbm [shape: f32[16,32], index: 12, kind: input, shape index: {}]
  %s13 = inlined_call_operand.hbm [shape: bf16[416,128], index: 13, kind: input, shape index: {}]
  %s14 = inlined_call_operand.vmem [shape: f32[1,128], index: 14, kind: input, shape index: {}]
  %s15 = inlined_call_operand.hbm [shape: f32[16,128], index: 15, kind: output, shape index: {}]
  %s16 = sld [smem:[#allocation0]]
  $region145: #{tpu_custom_call.1} parent=0
    _
  %s18 = ssub.s32 1, %s16
  %s19 = scalar_select 0, %s18, %s16
  $region1: #{tpu_custom_call.1} parent=0
    #allocation2 [shape = 'u8[8192]{0}', space=vmem, size = 0x2000, scoped, tag = 'input window, operand 0']
    #allocation3 [shape = 's32[2]{0}', space=sflag, size = 0x8, scoped, tag = 'scoped memory for tpu_custom_call.1']
    #allocation4 [shape = 's32[2]{0}', space=sflag, size = 0x8, scoped, tag = 'scoped memory for tpu_custom_call.1']
    #allocation5 [shape = 'u8[8192]{0}', space=vmem, size = 0x2000, scoped, tag = 'input window, operand 1']
    #allocation6 [shape = 's32[2]{0}', space=sflag, size = 0x8, scoped, tag = 'scoped memory for tpu_custom_call.1']
    #allocation7 [shape = 'u8[8192]{0}', space=vmem, size = 0x2000, scoped, tag = 'input window, operand 2']
    #allocation8 [shape = 'u8[8192]{0}', space=vmem, size = 0x2000, scoped, tag = 'input window, operand 3']
    #allocation9 [shape = 's32[2]{0}', space=sflag, size = 0x8, scoped, tag = 'scoped memory for tpu_custom_call.1']
    #allocation10 [shape = 'u8[8192]{0}', space=vmem, size = 0x2000, scoped, tag = 'input window, operand 4']
    #allocation11 [shape = 'u8[8192]{0}', space=vmem, size = 0x2000, scoped, tag = 'input window, operand 5']
    #allocation12 [shape = 's32[2]{0}', space=sflag, size = 0x8, scoped, tag = 'scoped memory for tpu_custom_call.1']
    #allocation13 [shape = 'u8[8192]{0}', space=vmem, size = 0x2000, scoped, tag = 'input window, operand 6']
    #allocation14 [shape = 'u8[8192]{0}', space=vmem, size = 0x2000, scoped, tag = 'input window, operand 7']
    #allocation15 [shape = 's32[2]{0}', space=sflag, size = 0x8, scoped, tag = 'scoped memory for tpu_custom_call.1']
    #allocation16 [shape = 'u8[8192]{0}', space=vmem, size = 0x2000, scoped, tag = 'input window, operand 8']
    #allocation17 [shape = 'u8[8192]{0}', space=vmem, size = 0x2000, scoped, tag = 'input window, operand 10']
    #allocation18 [shape = 's32[2]{0}', space=sflag, size = 0x8, scoped, tag = 'scoped memory for tpu_custom_call.1']
    #allocation19 [shape = 'u8[8192]{0}', space=vmem, size = 0x2000, scoped, tag = 'input window, operand 11']
    #allocation20 [shape = 'u8[8192]{0}', space=vmem, size = 0x2000, scoped, tag = 'input window, operand 12']
    #allocation21 [shape = 's32[2]{0}', space=sflag, size = 0x8, scoped, tag = 'scoped memory for tpu_custom_call.1']
    #allocation22 [shape = 'u8[106496]{0}', space=vmem, size = 0x1a000, scoped, tag = 'input window, operand 13, single buffered']
    #allocation23 [shape = 'u8[8192]{0}', space=vmem, size = 0x2000, scoped, tag = 'output window, operand 0']
    %20 = vsyncpa [#allocation3], 0
    %s21 = scalar_lea.sflag [#allocation3], 1
    %22 = vsyncpa %s21, 0
    %23 = vsyncpa [#allocation6], 0
    %s24 = scalar_lea.sflag [#allocation6], 1
    %25 = vsyncpa %s24, 0
    %26 = vsyncpa [#allocation9], 0
    %s27 = scalar_lea.sflag [#allocation9], 1
    %28 = vsyncpa %s27, 0
    %29 = vsyncpa [#allocation12], 0
    %s30 = scalar_lea.sflag [#allocation12], 1
    %31 = vsyncpa %s30, 0
    %32 = vsyncpa [#allocation15], 0
    %s33 = scalar_lea.sflag [#allocation15], 1
    %34 = vsyncpa %s33, 0
    %35 = vsyncpa [#allocation18], 0
    %s36 = scalar_lea.sflag [#allocation18], 1
    %37 = vsyncpa %s36, 0
    %38 = vsyncpa [#allocation21], 0
    %s39 = scalar_lea.sflag [#allocation21], 1
    %40 = vsyncpa %s39, 0
    %41 = vsyncpa [#allocation4], 0
    %s42 = scalar_lea.sflag [#allocation4], 1
    %43 = vsyncpa %s42, 0
    loop: start=0, step=1, limit=4
    $region2: #{tpu_custom_call.1} parent=1 // loop_pre_header
      _
    $region3: #{tpu_custom_call.1} parent=1 // loop_header
      %s45 = sphi 0, %s49
      %p46 = scmp.ge.s32.totalorder %s45, 4
      %s52 = sphi 0, %s64
      %s53 = sphi 0, %s60
      %s54 = sphi 0, %s52
      %s55 = sphi 0, %s53
      %s56 = sphi 0, %s54
      %s57 = sphi 0, %s55
      %s67 = sphi 0, %s69
      %s70 = sphi 0, %s67
      %s71 = sphi 0, %s70
      %s87 = sphi 0, %s71
      %s93 = sphi 0, %s95
      %s96 = sphi 0, %s93
      %s97 = sphi 0, %s96
      %s113 = sphi 0, %s97
      %s119 = sphi 0, %s121
      %s122 = sphi 0, %s119
      %s123 = sphi 0, %s122
      %s139 = sphi 0, %s123
      %s145 = sphi 0, %s147
      %s148 = sphi 0, %s145
      %s149 = sphi 0, %s148
      %s165 = sphi 0, %s149
      %s171 = sphi 0, %s173
      %s174 = sphi 0, %s171
      %s175 = sphi 0, %s174
      %s191 = sphi 0, %s175
      %s197 = sphi 0, %s199
      %s200 = sphi 0, %s197
      %s201 = sphi 0, %s200
      %s217 = sphi 0, %s201
      %s223 = sphi 0, %s225
      %s226 = sphi 0, %s223
      %s227 = sphi 0, %s226
      %s243 = sphi 0, %s227
      %s249 = sphi 0, %s251
      %s252 = sphi 0, %s249
      %s253 = sphi 0, %s252
      %s269 = sphi 0, %s253
      %s275 = sphi 0, %s277
      %s278 = sphi 0, %s275
      %s279 = sphi 0, %s278
      %s295 = sphi 0, %s279
      %s301 = sphi 0, %s303
      %s304 = sphi 0, %s301
      %s305 = sphi 0, %s304
      %s321 = sphi 0, %s305
      %s327 = sphi 0, %s329
      %s330 = sphi 0, %s327
      %s331 = sphi 0, %s330
      %s347 = sphi 0, %s331
      %s353 = sphi 0, %s355
      %s356 = sphi 0, %s353
      %s357 = sphi 0, %s356
      %s373 = sphi 0, %s357
      %s379 = sphi 0, %s381
      %s382 = sphi 0, %s379
      %s383 = sphi 0, %s382
      %s399 = sphi 0, %s383
      %s405 = sphi 0, %s407
      %s408 = sphi 0, %s405
      %s409 = sphi 0, %s408
      %s425 = sphi 0, %s409
      %s431 = sphi 0, %s433
      %s434 = sphi 0, %s431
      %s435 = sphi 0, %s434
      %s451 = sphi 0, %s435
      %s459 = sphi 0, %s461
      %s462 = sphi 0, %s459
      %s463 = sphi 0, %s462
      %s479 = sphi 0, %s463
    $region4: #{tpu_custom_call.1} parent=1 // loop_header_branch
      %48 = sbr.rel (%p46) target = $region8
    $region5: #{tpu_custom_call.1} parent=1 // loop_body
      %s50 = ssub.s32 %s45, 1
      %s51 = ssub.s32 %s45, 2
      %s58 = sadd.s32 1, %s53
      %p59 = scmp.ge.s32.totalorder %s58, 2
      %s60 = scalar_select %p59, 0, %s58
      %s61 = sadd.s32 1, %s52
      %s62 = scalar_select %p59, %s61, %s52
      %p63 = scmp.ge.s32.totalorder %s62, 1
      %s64 = scalar_select %p63, 0, %s62
      %s65 = ssub.s32 %s53, %s60
      %p66 = scmp.eq.s32.totalorder %s65, 0
      %s68 = sadd.s32 %s67, 1
      %s69 = scalar_select %p66, %s67, %s68
      %p72 = pneg %p66
      %p73 = scmp.eq.s32.totalorder %s45, 1
      %p74 = por %p72, %p73
      %p75 = scmp.ne.s32.totalorder %s67, %s70
      %p76 = scmp.eq.s32.totalorder %s45, 0
      %p77 = por %p75, %p76
      %p78 = scmp.ne.s32.totalorder %s67, %s70
      %p79 = scmp.eq.s32.totalorder %s50, 1
      %p80 = por %p78, %p79
      %p81 = scmp.ne.s32.totalorder %s70, %s71
      %p82 = scmp.eq.s32.totalorder %s50, 0
      %p83 = por %p81, %p82
      %p84 = scmp.ne.s32.totalorder %s70, %s71
      %p85 = scmp.eq.s32.totalorder %s51, 1
      %p86 = por %p84, %p85
      %p88 = scmp.ne.s32.totalorder %s71, %s87
      %p89 = scmp.eq.s32.totalorder %s51, 0
      %p90 = por %p88, %p89
      %s91 = ssub.s32 %s53, %s60
      %p92 = scmp.eq.s32.totalorder %s91, 0
      %s94 = sadd.s32 %s93, 1
      %s95 = scalar_select %p92, %s93, %s94
      %p98 = pneg %p92
      %p99 = scmp.eq.s32.totalorder %s45, 1
      %p100 = por %p98, %p99
      %p101 = scmp.ne.s32.totalorder %s93, %s96
      %p102 = scmp.eq.s32.totalorder %s45, 0
      %p103 = por %p101, %p102
      %p104 = scmp.ne.s32.totalorder %s93, %s96
      %p105 = scmp.eq.s32.totalorder %s50, 1
      %p106 = por %p104, %p105
      %p107 = scmp.ne.s32.totalorder %s96, %s97
      %p108 = scmp.eq.s32.totalorder %s50, 0
      %p109 = por %p107, %p108
      %p110 = scmp.ne.s32.totalorder %s96, %s97
      %p111 = scmp.eq.s32.totalorder %s51, 1
      %p112 = por %p110, %p111
      %p114 = scmp.ne.s32.totalorder %s97, %s113
      %p115 = scmp.eq.s32.totalorder %s51, 0
      %p116 = por %p114, %p115
      %s117 = ssub.s32 %s53, %s60
      %p118 = scmp.eq.s32.totalorder %s117, 0
      %s120 = sadd.s32 %s119, 1
      %s121 = scalar_select %p118, %s119, %s120
      %p124 = pneg %p118
      %p125 = scmp.eq.s32.totalorder %s45, 1
      %p126 = por %p124, %p125
      %p127 = scmp.ne.s32.totalorder %s119, %s122
      %p128 = scmp.eq.s32.totalorder %s45, 0
      %p129 = por %p127, %p128
      %p130 = scmp.ne.s32.totalorder %s119, %s122
      %p131 = scmp.eq.s32.totalorder %s50, 1
      %p132 = por %p130, %p131
      %p133 = scmp.ne.s32.totalorder %s122, %s123
      %p134 = scmp.eq.s32.totalorder %s50, 0
      %p135 = por %p133, %p134
      %p136 = scmp.ne.s32.totalorder %s122, %s123
      %p137 = scmp.eq.s32.totalorder %s51, 1
      %p138 = por %p136, %p137
      %p140 = scmp.ne.s32.totalorder %s123, %s139
      %p141 = scmp.eq.s32.totalorder %s51, 0
      %p142 = por %p140, %p141
      %s143 = ssub.s32 %s53, %s60
      %p144 = scmp.eq.s32.totalorder %s143, 0
      %s146 = sadd.s32 %s145, 1
      %s147 = scalar_select %p144, %s145, %s146
      %p150 = pneg %p144
      %p151 = scmp.eq.s32.totalorder %s45, 1
      %p152 = por %p150, %p151
      %p153 = scmp.ne.s32.totalorder %s145, %s148
      %p154 = scmp.eq.s32.totalorder %s45, 0
      %p155 = por %p153, %p154
      %p156 = scmp.ne.s32.totalorder %s145, %s148
      %p157 = scmp.eq.s32.totalorder %s50, 1
      %p158 = por %p156, %p157
      %p159 = scmp.ne.s32.totalorder %s148, %s149
      %p160 = scmp.eq.s32.totalorder %s50, 0
      %p161 = por %p159, %p160
      %p162 = scmp.ne.s32.totalorder %s148, %s149
      %p163 = scmp.eq.s32.totalorder %s51, 1
      %p164 = por %p162, %p163
      %p166 = scmp.ne.s32.totalorder %s149, %s165
      %p167 = scmp.eq.s32.totalorder %s51, 0
      %p168 = por %p166, %p167
      %s169 = ssub.s32 %s53, %s60
      %p170 = scmp.eq.s32.totalorder %s169, 0
      %s172 = sadd.s32 %s171, 1
      %s173 = scalar_select %p170, %s171, %s172
      %p176 = pneg %p170
      %p177 = scmp.eq.s32.totalorder %s45, 1
      %p178 = por %p176, %p177
      %p179 = scmp.ne.s32.totalorder %s171, %s174
      %p180 = scmp.eq.s32.totalorder %s45, 0
      %p181 = por %p179, %p180
      %p182 = scmp.ne.s32.totalorder %s171, %s174
      %p183 = scmp.eq.s32.totalorder %s50, 1
      %p184 = por %p182, %p183
      %p185 = scmp.ne.s32.totalorder %s174, %s175
      %p186 = scmp.eq.s32.totalorder %s50, 0
      %p187 = por %p185, %p186
      %p188 = scmp.ne.s32.totalorder %s174, %s175
      %p189 = scmp.eq.s32.totalorder %s51, 1
      %p190 = por %p188, %p189
      %p192 = scmp.ne.s32.totalorder %s175, %s191
      %p193 = scmp.eq.s32.totalorder %s51, 0
      %p194 = por %p192, %p193
      %s195 = ssub.s32 %s53, %s60
      %p196 = scmp.eq.s32.totalorder %s195, 0
      %s198 = sadd.s32 %s197, 1
      %s199 = scalar_select %p196, %s197, %s198
      %p202 = pneg %p196
      %p203 = scmp.eq.s32.totalorder %s45, 1
      %p204 = por %p202, %p203
      %p205 = scmp.ne.s32.totalorder %s197, %s200
      %p206 = scmp.eq.s32.totalorder %s45, 0
      %p207 = por %p205, %p206
      %p208 = scmp.ne.s32.totalorder %s197, %s200
      %p209 = scmp.eq.s32.totalorder %s50, 1
      %p210 = por %p208, %p209
      %p211 = scmp.ne.s32.totalorder %s200, %s201
      %p212 = scmp.eq.s32.totalorder %s50, 0
      %p213 = por %p211, %p212
      %p214 = scmp.ne.s32.totalorder %s200, %s201
      %p215 = scmp.eq.s32.totalorder %s51, 1
      %p216 = por %p214, %p215
      %p218 = scmp.ne.s32.totalorder %s201, %s217
      %p219 = scmp.eq.s32.totalorder %s51, 0
      %p220 = por %p218, %p219
      %s221 = ssub.s32 %s53, %s60
      %p222 = scmp.eq.s32.totalorder %s221, 0
      %s224 = sadd.s32 %s223, 1
      %s225 = scalar_select %p222, %s223, %s224
      %p228 = pneg %p222
      %p229 = scmp.eq.s32.totalorder %s45, 1
      %p230 = por %p228, %p229
      %p231 = scmp.ne.s32.totalorder %s223, %s226
      %p232 = scmp.eq.s32.totalorder %s45, 0
      %p233 = por %p231, %p232
      %p234 = scmp.ne.s32.totalorder %s223, %s226
      %p235 = scmp.eq.s32.totalorder %s50, 1
      %p236 = por %p234, %p235
      %p237 = scmp.ne.s32.totalorder %s226, %s227
      %p238 = scmp.eq.s32.totalorder %s50, 0
      %p239 = por %p237, %p238
      %p240 = scmp.ne.s32.totalorder %s226, %s227
      %p241 = scmp.eq.s32.totalorder %s51, 1
      %p242 = por %p240, %p241
      %p244 = scmp.ne.s32.totalorder %s227, %s243
      %p245 = scmp.eq.s32.totalorder %s51, 0
      %p246 = por %p244, %p245
      %s247 = ssub.s32 %s53, %s60
      %p248 = scmp.eq.s32.totalorder %s247, 0
      %s250 = sadd.s32 %s249, 1
      %s251 = scalar_select %p248, %s249, %s250
      %p254 = pneg %p248
      %p255 = scmp.eq.s32.totalorder %s45, 1
      %p256 = por %p254, %p255
      %p257 = scmp.ne.s32.totalorder %s249, %s252
      %p258 = scmp.eq.s32.totalorder %s45, 0
      %p259 = por %p257, %p258
      %p260 = scmp.ne.s32.totalorder %s249, %s252
      %p261 = scmp.eq.s32.totalorder %s50, 1
      %p262 = por %p260, %p261
      %p263 = scmp.ne.s32.totalorder %s252, %s253
      %p264 = scmp.eq.s32.totalorder %s50, 0
      %p265 = por %p263, %p264
      %p266 = scmp.ne.s32.totalorder %s252, %s253
      %p267 = scmp.eq.s32.totalorder %s51, 1
      %p268 = por %p266, %p267
      %p270 = scmp.ne.s32.totalorder %s253, %s269
      %p271 = scmp.eq.s32.totalorder %s51, 0
      %p272 = por %p270, %p271
      %s273 = ssub.s32 %s53, %s60
      %p274 = scmp.eq.s32.totalorder %s273, 0
      %s276 = sadd.s32 %s275, 1
      %s277 = scalar_select %p274, %s275, %s276
      %p280 = pneg %p274
      %p281 = scmp.eq.s32.totalorder %s45, 1
      %p282 = por %p280, %p281
      %p283 = scmp.ne.s32.totalorder %s275, %s278
      %p284 = scmp.eq.s32.totalorder %s45, 0
      %p285 = por %p283, %p284
      %p286 = scmp.ne.s32.totalorder %s275, %s278
      %p287 = scmp.eq.s32.totalorder %s50, 1
      %p288 = por %p286, %p287
      %p289 = scmp.ne.s32.totalorder %s278, %s279
      %p290 = scmp.eq.s32.totalorder %s50, 0
      %p291 = por %p289, %p290
      %p292 = scmp.ne.s32.totalorder %s278, %s279
      %p293 = scmp.eq.s32.totalorder %s51, 1
      %p294 = por %p292, %p293
      %p296 = scmp.ne.s32.totalorder %s279, %s295
      %p297 = scmp.eq.s32.totalorder %s51, 0
      %p298 = por %p296, %p297
      %s299 = ssub.s32 %s53, %s60
      %p300 = scmp.eq.s32.totalorder %s299, 0
      %s302 = sadd.s32 %s301, 1
      %s303 = scalar_select %p300, %s301, %s302
      %p306 = pneg %p300
      %p307 = scmp.eq.s32.totalorder %s45, 1
      %p308 = por %p306, %p307
      %p309 = scmp.ne.s32.totalorder %s301, %s304
      %p310 = scmp.eq.s32.totalorder %s45, 0
      %p311 = por %p309, %p310
      %p312 = scmp.ne.s32.totalorder %s301, %s304
      %p313 = scmp.eq.s32.totalorder %s50, 1
      %p314 = por %p312, %p313
      %p315 = scmp.ne.s32.totalorder %s304, %s305
      %p316 = scmp.eq.s32.totalorder %s50, 0
      %p317 = por %p315, %p316
      %p318 = scmp.ne.s32.totalorder %s304, %s305
      %p319 = scmp.eq.s32.totalorder %s51, 1
      %p320 = por %p318, %p319
      %p322 = scmp.ne.s32.totalorder %s305, %s321
      %p323 = scmp.eq.s32.totalorder %s51, 0
      %p324 = por %p322, %p323
      %s325 = ssub.s32 %s53, %s60
      %p326 = scmp.eq.s32.totalorder %s325, 0
      %s328 = sadd.s32 %s327, 1
      %s329 = scalar_select %p326, %s327, %s328
      %p332 = pneg %p326
      %p333 = scmp.eq.s32.totalorder %s45, 1
      %p334 = por %p332, %p333
      %p335 = scmp.ne.s32.totalorder %s327, %s330
      %p336 = scmp.eq.s32.totalorder %s45, 0
      %p337 = por %p335, %p336
      %p338 = scmp.ne.s32.totalorder %s327, %s330
      %p339 = scmp.eq.s32.totalorder %s50, 1
      %p340 = por %p338, %p339
      %p341 = scmp.ne.s32.totalorder %s330, %s331
      %p342 = scmp.eq.s32.totalorder %s50, 0
      %p343 = por %p341, %p342
      %p344 = scmp.ne.s32.totalorder %s330, %s331
      %p345 = scmp.eq.s32.totalorder %s51, 1
      %p346 = por %p344, %p345
      %p348 = scmp.ne.s32.totalorder %s331, %s347
      %p349 = scmp.eq.s32.totalorder %s51, 0
      %p350 = por %p348, %p349
      %s351 = ssub.s32 %s53, %s60
      %p352 = scmp.eq.s32.totalorder %s351, 0
      %s354 = sadd.s32 %s353, 1
      %s355 = scalar_select %p352, %s353, %s354
      %p358 = pneg %p352
      %p359 = scmp.eq.s32.totalorder %s45, 1
      %p360 = por %p358, %p359
      %p361 = scmp.ne.s32.totalorder %s353, %s356
      %p362 = scmp.eq.s32.totalorder %s45, 0
      %p363 = por %p361, %p362
      %p364 = scmp.ne.s32.totalorder %s353, %s356
      %p365 = scmp.eq.s32.totalorder %s50, 1
      %p366 = por %p364, %p365
      %p367 = scmp.ne.s32.totalorder %s356, %s357
      %p368 = scmp.eq.s32.totalorder %s50, 0
      %p369 = por %p367, %p368
      %p370 = scmp.ne.s32.totalorder %s356, %s357
      %p371 = scmp.eq.s32.totalorder %s51, 1
      %p372 = por %p370, %p371
      %p374 = scmp.ne.s32.totalorder %s357, %s373
      %p375 = scmp.eq.s32.totalorder %s51, 0
      %p376 = por %p374, %p375
      %s377 = ssub.s32 %s53, %s60
      %p378 = scmp.eq.s32.totalorder %s377, 0
      %s380 = sadd.s32 %s379, 1
      %s381 = scalar_select %p378, %s379, %s380
      %p384 = pneg %p378
      %p385 = scmp.eq.s32.totalorder %s45, 1
      %p386 = por %p384, %p385
      %p387 = scmp.ne.s32.totalorder %s379, %s382
      %p388 = scmp.eq.s32.totalorder %s45, 0
      %p389 = por %p387, %p388
      %p390 = scmp.ne.s32.totalorder %s379, %s382
      %p391 = scmp.eq.s32.totalorder %s50, 1
      %p392 = por %p390, %p391
      %p393 = scmp.ne.s32.totalorder %s382, %s383
      %p394 = scmp.eq.s32.totalorder %s50, 0
      %p395 = por %p393, %p394
      %p396 = scmp.ne.s32.totalorder %s382, %s383
      %p397 = scmp.eq.s32.totalorder %s51, 1
      %p398 = por %p396, %p397
      %p400 = scmp.ne.s32.totalorder %s383, %s399
      %p401 = scmp.eq.s32.totalorder %s51, 0
      %p402 = por %p400, %p401
      %s403 = ssub.s32 %s52, %s64
      %p404 = scmp.eq.s32.totalorder %s403, 0
      %s406 = sadd.s32 %s405, 1
      %s407 = scalar_select %p404, %s405, %s406
      %p410 = pneg %p404
      %p411 = scmp.eq.s32.totalorder %s45, 1
      %p412 = por %p410, %p411
      %p413 = scmp.ne.s32.totalorder %s405, %s408
      %p414 = scmp.eq.s32.totalorder %s45, 0
      %p415 = por %p413, %p414
      %p416 = scmp.ne.s32.totalorder %s405, %s408
      %p417 = scmp.eq.s32.totalorder %s50, 1
      %p418 = por %p416, %p417
      %p419 = scmp.ne.s32.totalorder %s408, %s409
      %p420 = scmp.eq.s32.totalorder %s50, 0
      %p421 = por %p419, %p420
      %p422 = scmp.ne.s32.totalorder %s408, %s409
      %p423 = scmp.eq.s32.totalorder %s51, 1
      %p424 = por %p422, %p423
      %p426 = scmp.ne.s32.totalorder %s409, %s425
      %p427 = scmp.eq.s32.totalorder %s51, 0
      %p428 = por %p426, %p427
      %s429 = ssub.s32 %s52, %s64
      %p430 = scmp.eq.s32.totalorder %s429, 0
      %s432 = sadd.s32 %s431, 1
      %s433 = scalar_select %p430, %s431, %s432
      %p436 = pneg %p430
      %p437 = scmp.eq.s32.totalorder %s45, 1
      %p438 = por %p436, %p437
      %p439 = scmp.ne.s32.totalorder %s431, %s434
      %p440 = scmp.eq.s32.totalorder %s45, 0
      %p441 = por %p439, %p440
      %p442 = scmp.ne.s32.totalorder %s431, %s434
      %p443 = scmp.eq.s32.totalorder %s50, 1
      %p444 = por %p442, %p443
      %p445 = scmp.ne.s32.totalorder %s434, %s435
      %p446 = scmp.eq.s32.totalorder %s50, 0
      %p447 = por %p445, %p446
      %p448 = scmp.ne.s32.totalorder %s434, %s435
      %p449 = scmp.eq.s32.totalorder %s51, 1
      %p450 = por %p448, %p449
      %p452 = scmp.ne.s32.totalorder %s435, %s451
      %p453 = scmp.eq.s32.totalorder %s51, 0
      %p454 = por %p452, %p453
      %s455 = ssub.s32 %s53, %s60
      %s456 = ssub.s32 %s52, %s64
      %s457 = sor.u32 %s455, %s456
      %p458 = scmp.eq.s32.totalorder %s457, 0
      %s460 = sadd.s32 %s459, 1
      %s461 = scalar_select %p458, %s459, %s460
      %p464 = pneg %p458
      %p465 = scmp.eq.s32.totalorder %s45, 1
      %p466 = por %p464, %p465
      %p467 = scmp.ne.s32.totalorder %s459, %s462
      %p468 = scmp.eq.s32.totalorder %s45, 0
      %p469 = por %p467, %p468
      %p470 = scmp.ne.s32.totalorder %s459, %s462
      %p471 = scmp.eq.s32.totalorder %s50, 1
      %p472 = por %p470, %p471
      %p473 = scmp.ne.s32.totalorder %s462, %s463
      %p474 = scmp.eq.s32.totalorder %s50, 0
      %p475 = por %p473, %p474
      %p476 = scmp.ne.s32.totalorder %s462, %s463
      %p477 = scmp.eq.s32.totalorder %s51, 1
      %p478 = por %p476, %p477
      %p480 = scmp.ne.s32.totalorder %s463, %s479
      %p481 = scmp.eq.s32.totalorder %s51, 0
      %p482 = por %p480, %p481
      %p483 = scmp.le.s32.totalorder 1, %s45
      %p484 = scmp.lt.s32.totalorder %s45, 3
      %p485 = pnand %p483, %p484
      %p486 = pneg %p485
      // Predicated region
      $region9: #{tpu_custom_call.1} parent=5 // pred_check
        _
      $region10: #{tpu_custom_call.1} parent=5 // pred_check_branch
        %488 = sbr.rel (%p485) target = $region12
      $region11: #{tpu_custom_call.1} parent=5 // pred_region
        %s489 = ssub.s32 %s45, 1
        // Predicated region
        $region13: #{tpu_custom_call.1} parent=11 // pred_check
          %p490 = pneg %p421
        $region14: #{tpu_custom_call.1} parent=11 // pred_check_branch
          %492 = sbr.rel (%p490) target = $region16
        $region15: #{tpu_custom_call.1} parent=11 // pred_region
          %s494 = ssub.s32 3328, 3328
          %495 = vsyncadd [#allocation21], %s494
          %s496 = smul.addr %s54, 64
          %s497 = scalar_lea.hbm %s13, %s496
          %s498 = sshll.u32 [#allocation22], 4
          %s499 = int_to_ptr.vmem [resolvable:$true] %s498
          %504 = dma.hbm_to_vmem [thread:$0]  %s497, 3328, %s499, [#allocation21], 64, 64, 4
        $region16: #{tpu_custom_call.1} parent=11 // pred_fallthru
          _
        // Predicated region
        $region17: #{tpu_custom_call.1} parent=11 // pred_check
          %p505 = pneg %p447
        $region18: #{tpu_custom_call.1} parent=11 // pred_check_branch
          %507 = sbr.rel (%p505) target = $region20
        $region19: #{tpu_custom_call.1} parent=11 // pred_region
          %p508 = scmp.lt.s32.totalorder %s54, 0
          %s509 = scalar_select %p508, %s54, 0
          %s510 = scalar_lea.vmem %s14, %s509
        $region20: #{tpu_custom_call.1} parent=11 // pred_fallthru
          _
      $region12: #{tpu_custom_call.1} parent=5 // pred_fallthru
        _
      %p511 = scmp.lt.s32.totalorder %s45, 2
      // Predicated region
      $region21: #{tpu_custom_call.1} parent=5 // pred_check
        %p512 = pneg %p511
      $region22: #{tpu_custom_call.1} parent=5 // pred_check_branch
        %514 = sbr.rel (%p512) target = $region24
      $region23: #{tpu_custom_call.1} parent=5 // pred_region
        // Predicated region
        $region25: #{tpu_custom_call.1} parent=23 // pred_check
          %p515 = pneg %p77
        $region26: #{tpu_custom_call.1} parent=23 // pred_check_branch
          %517 = sbr.rel (%p515) target = $region28
        $region27: #{tpu_custom_call.1} parent=23 // pred_region
          %s518 = sand.u32 %s67, 1
          %s519 = scalar_lea.sflag [#allocation3], %s518
          %s520 = sand.u32 %s67, 1
          %s521 = smul.addr %s520, 8
          %s522 = scalar_lea.vmem [#allocation2], %s521
          %s524 = ssub.s32 128, 128
          %525 = vsyncadd %s519, %s524
          %s526 = smul.addr %s53, 128
          %s527 = scalar_lea.hbm %s0, %s526
          %s529 = sshll.u32 %s522, 4
          %s530 = int_to_ptr.vmem [resolvable:$true] %s529
          %532 = dma.hbm_to_vmem [thread:$0]  %s527, 128, %s530, %s519
        $region28: #{tpu_custom_call.1} parent=23 // pred_fallthru
          _
        // Predicated region
        $region29: #{tpu_custom_call.1} parent=23 // pred_check
          %p533 = pneg %p103
        $region30: #{tpu_custom_call.1} parent=23 // pred_check_branch
          %535 = sbr.rel (%p533) target = $region32
        $region31: #{tpu_custom_call.1} parent=23 // pred_region
          %s536 = sand.u32 %s45, 1
          %s537 = scalar_lea.sflag [#allocation6], %s536
          %s538 = sand.u32 %s93, 1
          %s539 = smul.addr %s538, 8
          %s540 = scalar_lea.vmem [#allocation5], %s539
          %s542 = ssub.s32 128, 128
          %543 = vsyncadd %s537, %s542
          %s544 = smul.addr %s53, 128
          %s545 = scalar_lea.hbm %s1, %s544
          %s547 = sshll.u32 %s540, 4
          %s548 = int_to_ptr.vmem [resolvable:$true] %s547
          %550 = dma.hbm_to_vmem [thread:$0]  %s545, 128, %s548, %s537
        $region32: #{tpu_custom_call.1} parent=23 // pred_fallthru
          _
        // Predicated region
        $region33: #{tpu_custom_call.1} parent=23 // pred_check
          %p551 = pneg %p129
        $region34: #{tpu_custom_call.1} parent=23 // pred_check_branch
          %553 = sbr.rel (%p551) target = $region36
        $region35: #{tpu_custom_call.1} parent=23 // pred_region
          %s554 = sand.u32 %s45, 1
          %s555 = scalar_lea.sflag [#allocation6], %s554
          %s556 = sand.u32 %s119, 1
          %s557 = smul.addr %s556, 8
          %s558 = scalar_lea.vmem [#allocation7], %s557
          %s560 = ssub.s32 128, 128
          %561 = vsyncadd %s555, %s560
          %s562 = smul.addr %s53, 128
          %s563 = scalar_lea.hbm %s2, %s562
          %s565 = sshll.u32 %s558, 4
          %s566 = int_to_ptr.vmem [resolvable:$true] %s565
          %568 = dma.hbm_to_vmem [thread:$0]  %s563, 128, %s566, %s555
        $region36: #{tpu_custom_call.1} parent=23 // pred_fallthru
          _
        // Predicated region
        $region37: #{tpu_custom_call.1} parent=23 // pred_check
          %p569 = pneg %p155
        $region38: #{tpu_custom_call.1} parent=23 // pred_check_branch
          %571 = sbr.rel (%p569) target = $region40
        $region39: #{tpu_custom_call.1} parent=23 // pred_region
          %s572 = sand.u32 %s45, 1
          %s573 = scalar_lea.sflag [#allocation9], %s572
          %s574 = sand.u32 %s145, 1
          %s575 = smul.addr %s574, 8
          %s576 = scalar_lea.vmem [#allocation8], %s575
          %s578 = ssub.s32 128, 128
          %579 = vsyncadd %s573, %s578
          %s580 = smul.addr %s53, 128
          %s581 = scalar_lea.hbm %s3, %s580
          %s583 = sshll.u32 %s576, 4
          %s584 = int_to_ptr.vmem [resolvable:$true] %s583
          %586 = dma.hbm_to_vmem [thread:$0]  %s581, 128, %s584, %s573
        $region40: #{tpu_custom_call.1} parent=23 // pred_fallthru
          _
        // Predicated region
        $region41: #{tpu_custom_call.1} parent=23 // pred_check
          %p587 = pneg %p181
        $region42: #{tpu_custom_call.1} parent=23 // pred_check_branch
          %589 = sbr.rel (%p587) target = $region44
        $region43: #{tpu_custom_call.1} parent=23 // pred_region
          %s590 = sand.u32 %s45, 1
          %s591 = scalar_lea.sflag [#allocation9], %s590
          %s592 = sand.u32 %s171, 1
          %s593 = smul.addr %s592, 8
          %s594 = scalar_lea.vmem [#allocation10], %s593
          %s596 = ssub.s32 128, 128
          %597 = vsyncadd %s591, %s596
          %s598 = smul.addr %s53, 128
          %s599 = scalar_lea.hbm %s4, %s598
          %s601 = sshll.u32 %s594, 4
          %s602 = int_to_ptr.vmem [resolvable:$true] %s601
          %604 = dma.hbm_to_vmem [thread:$0]  %s599, 128, %s602, %s591
        $region44: #{tpu_custom_call.1} parent=23 // pred_fallthru
          _
        // Predicated region
        $region45: #{tpu_custom_call.1} parent=23 // pred_check
          %p605 = pneg %p207
        $region46: #{tpu_custom_call.1} parent=23 // pred_check_branch
          %607 = sbr.rel (%p605) target = $region48
        $region47: #{tpu_custom_call.1} parent=23 // pred_region
          %s608 = sand.u32 %s45, 1
          %s609 = scalar_lea.sflag [#allocation12], %s608
          %s610 = sand.u32 %s197, 1
          %s611 = smul.addr %s610, 8
          %s612 = scalar_lea.vmem [#allocation11], %s611
          %s614 = ssub.s32 128, 128
          %615 = vsyncadd %s609, %s614
          %s616 = smul.addr %s53, 128
          %s617 = scalar_lea.hbm %s5, %s616
          %s619 = sshll.u32 %s612, 4
          %s620 = int_to_ptr.vmem [resolvable:$true] %s619
          %622 = dma.hbm_to_vmem [thread:$0]  %s617, 128, %s620, %s609
        $region48: #{tpu_custom_call.1} parent=23 // pred_fallthru
          _
        // Predicated region
        $region49: #{tpu_custom_call.1} parent=23 // pred_check
          %p623 = pneg %p233
        $region50: #{tpu_custom_call.1} parent=23 // pred_check_branch
          %625 = sbr.rel (%p623) target = $region52
        $region51: #{tpu_custom_call.1} parent=23 // pred_region
          %s626 = sand.u32 %s45, 1
          %s627 = scalar_lea.sflag [#allocation12], %s626
          %s628 = sand.u32 %s223, 1
          %s629 = smul.addr %s628, 8
          %s630 = scalar_lea.vmem [#allocation13], %s629
          %s632 = ssub.s32 128, 128
          %633 = vsyncadd %s627, %s632
          %s634 = smul.addr %s53, 128
          %s635 = scalar_lea.hbm %s6, %s634
          %s637 = sshll.u32 %s630, 4
          %s638 = int_to_ptr.vmem [resolvable:$true] %s637
          %640 = dma.hbm_to_vmem [thread:$0]  %s635, 128, %s638, %s627
        $region52: #{tpu_custom_call.1} parent=23 // pred_fallthru
          _
        // Predicated region
        $region53: #{tpu_custom_call.1} parent=23 // pred_check
          %p641 = pneg %p259
        $region54: #{tpu_custom_call.1} parent=23 // pred_check_branch
          %643 = sbr.rel (%p641) target = $region56
        $region55: #{tpu_custom_call.1} parent=23 // pred_region
          %s644 = sand.u32 %s45, 1
          %s645 = scalar_lea.sflag [#allocation15], %s644
          %s646 = sand.u32 %s249, 1
          %s647 = smul.addr %s646, 8
          %s648 = scalar_lea.vmem [#allocation14], %s647
          %s650 = ssub.s32 128, 128
          %651 = vsyncadd %s645, %s650
          %s652 = smul.addr %s53, 128
          %s653 = scalar_lea.hbm %s7, %s652
          %s655 = sshll.u32 %s648, 4
          %s656 = int_to_ptr.vmem [resolvable:$true] %s655
          %658 = dma.hbm_to_vmem [thread:$0]  %s653, 128, %s656, %s645
        $region56: #{tpu_custom_call.1} parent=23 // pred_fallthru
          _
        // Predicated region
        $region57: #{tpu_custom_call.1} parent=23 // pred_check
          %p659 = pneg %p285
        $region58: #{tpu_custom_call.1} parent=23 // pred_check_branch
          %661 = sbr.rel (%p659) target = $region60
        $region59: #{tpu_custom_call.1} parent=23 // pred_region
          %s662 = sand.u32 %s45, 1
          %s663 = scalar_lea.sflag [#allocation15], %s662
          %s664 = sand.u32 %s275, 1
          %s665 = smul.addr %s664, 8
          %s666 = scalar_lea.vmem [#allocation16], %s665
          %s668 = ssub.s32 128, 128
          %669 = vsyncadd %s663, %s668
          %s670 = smul.addr %s53, 128
          %s671 = scalar_lea.hbm %s8, %s670
          %s673 = sshll.u32 %s666, 4
          %s674 = int_to_ptr.vmem [resolvable:$true] %s673
          %676 = dma.hbm_to_vmem [thread:$0]  %s671, 128, %s674, %s663
        $region60: #{tpu_custom_call.1} parent=23 // pred_fallthru
          _
        // Predicated region
        $region61: #{tpu_custom_call.1} parent=23 // pred_check
          %p677 = pneg %p311
        $region62: #{tpu_custom_call.1} parent=23 // pred_check_branch
          %679 = sbr.rel (%p677) target = $region64
        $region63: #{tpu_custom_call.1} parent=23 // pred_region
          %p680 = scmp.lt.s32.totalorder %s53, 1
          %s681 = scalar_select %p680, %s53, 1
          %s682 = smul.addr %s681, 8
          %s683 = scalar_lea.vmem %s9, %s682
        $region64: #{tpu_custom_call.1} parent=23 // pred_fallthru
          _
        // Predicated region
        $region65: #{tpu_custom_call.1} parent=23 // pred_check
          %p684 = pneg %p337
        $region66: #{tpu_custom_call.1} parent=23 // pred_check_branch
          %686 = sbr.rel (%p684) target = $region68
        $region67: #{tpu_custom_call.1} parent=23 // pred_region
          %s687 = sand.u32 %s45, 1
          %s688 = scalar_lea.sflag [#allocation18], %s687
          %s689 = sand.u32 %s327, 1
          %s690 = smul.addr %s689, 8
          %s691 = scalar_lea.vmem [#allocation17], %s690
          %s693 = ssub.s32 128, 128
          %694 = vsyncadd %s688, %s693
          %s695 = smul.addr %s53, 128
          %s696 = scalar_lea.hbm %s10, %s695
          %s698 = sshll.u32 %s691, 4
          %s699 = int_to_ptr.vmem [resolvable:$true] %s698
          %701 = dma.hbm_to_vmem [thread:$0]  %s696, 128, %s699, %s688
        $region68: #{tpu_custom_call.1} parent=23 // pred_fallthru
          _
        // Predicated region
        $region69: #{tpu_custom_call.1} parent=23 // pred_check
          %p702 = pneg %p363
        $region70: #{tpu_custom_call.1} parent=23 // pred_check_branch
          %704 = sbr.rel (%p702) target = $region72
        $region71: #{tpu_custom_call.1} parent=23 // pred_region
          %s705 = sand.u32 %s45, 1
          %s706 = scalar_lea.sflag [#allocation18], %s705
          %s707 = sand.u32 %s353, 1
          %s708 = smul.addr %s707, 8
          %s709 = scalar_lea.vmem [#allocation19], %s708
          %s711 = ssub.s32 128, 128
          %712 = vsyncadd %s706, %s711
          %s713 = smul.addr %s53, 128
          %s714 = scalar_lea.hbm %s11, %s713
          %s716 = sshll.u32 %s709, 4
          %s717 = int_to_ptr.vmem [resolvable:$true] %s716
          %719 = dma.hbm_to_vmem [thread:$0]  %s714, 128, %s717, %s706
        $region72: #{tpu_custom_call.1} parent=23 // pred_fallthru
          _
        // Predicated region
        $region73: #{tpu_custom_call.1} parent=23 // pred_check
          %p720 = pneg %p389
        $region74: #{tpu_custom_call.1} parent=23 // pred_check_branch
          %722 = sbr.rel (%p720) target = $region76
        $region75: #{tpu_custom_call.1} parent=23 // pred_region
          %s723 = sand.u32 %s45, 1
          %s724 = scalar_lea.sflag [#allocation21], %s723
          %s725 = sand.u32 %s379, 1
          %s726 = smul.addr %s725, 8
          %s727 = scalar_lea.vmem [#allocation20], %s726
          %s729 = ssub.s32 128, 128
          %730 = vsyncadd %s724, %s729
          %s731 = smul.addr %s53, 128
          %s732 = scalar_lea.hbm %s12, %s731
          %s734 = sshll.u32 %s727, 4
          %s735 = int_to_ptr.vmem [resolvable:$true] %s734
          %737 = dma.hbm_to_vmem [thread:$0]  %s732, 128, %s735, %s724
        $region76: #{tpu_custom_call.1} parent=23 // pred_fallthru
          _
      $region24: #{tpu_custom_call.1} parent=5 // pred_fallthru
        _
      %p738 = scmp.le.s32.totalorder 1, %s45
      %p739 = scmp.lt.s32.totalorder %s45, 3
      %p740 = pnand %p738, %p739
      %p741 = pneg %p740
      // Predicated region
      $region77: #{tpu_custom_call.1} parent=5 // pred_check
        _
      $region78: #{tpu_custom_call.1} parent=5 // pred_check_branch
        %743 = sbr.rel (%p740) target = $region80
      $region79: #{tpu_custom_call.1} parent=5 // pred_region
        %s744 = ssub.s32 %s45, 1
        %s745 = sand.u32 %s70, 1
        %s746 = scalar_lea.sflag [#allocation3], %s745
        %s747 = sand.u32 %s70, 1
        %s748 = smul.addr %s747, 8
        %s749 = scalar_lea.vmem [#allocation2], %s748
        // Predicated region
        $region81: #{tpu_custom_call.1} parent=79 // pred_check
          %p750 = pneg %p83
        $region82: #{tpu_custom_call.1} parent=79 // pred_check_branch
          %752 = sbr.rel (%p750) target = $region84
        $region83: #{tpu_custom_call.1} parent=79 // pred_region
          %753 = dma.done %s746, 128
        $region84: #{tpu_custom_call.1} parent=79 // pred_fallthru
          _
        %s754 = sand.u32 %s50, 1
        %s755 = scalar_lea.sflag [#allocation6], %s754
        %s756 = sand.u32 %s96, 1
        %s757 = smul.addr %s756, 8
        %s758 = scalar_lea.vmem [#allocation5], %s757
        // Predicated region
        $region85: #{tpu_custom_call.1} parent=79 // pred_check
          %p759 = pneg %p109
        $region86: #{tpu_custom_call.1} parent=79 // pred_check_branch
          %761 = sbr.rel (%p759) target = $region88
        $region87: #{tpu_custom_call.1} parent=79 // pred_region
          %762 = dma.done %s755, 128
        $region88: #{tpu_custom_call.1} parent=79 // pred_fallthru
          _
        %s763 = sand.u32 %s50, 1
        %s764 = scalar_lea.sflag [#allocation6], %s763
        %s765 = sand.u32 %s122, 1
        %s766 = smul.addr %s765, 8
        %s767 = scalar_lea.vmem [#allocation7], %s766
        // Predicated region
        $region89: #{tpu_custom_call.1} parent=79 // pred_check
          %p768 = pneg %p135
        $region90: #{tpu_custom_call.1} parent=79 // pred_check_branch
          %770 = sbr.rel (%p768) target = $region92
        $region91: #{tpu_custom_call.1} parent=79 // pred_region
          %771 = dma.done %s764, 128
        $region92: #{tpu_custom_call.1} parent=79 // pred_fallthru
          _
        %s772 = sand.u32 %s50, 1
        %s773 = scalar_lea.sflag [#allocation9], %s772
        %s774 = sand.u32 %s148, 1
        %s775 = smul.addr %s774, 8
        %s776 = scalar_lea.vmem [#allocation8], %s775
        // Predicated region
        $region93: #{tpu_custom_call.1} parent=79 // pred_check
          %p777 = pneg %p161
        $region94: #{tpu_custom_call.1} parent=79 // pred_check_branch
          %779 = sbr.rel (%p777) target = $region96
        $region95: #{tpu_custom_call.1} parent=79 // pred_region
          %780 = dma.done %s773, 128
        $region96: #{tpu_custom_call.1} parent=79 // pred_fallthru
          _
        %s781 = sand.u32 %s50, 1
        %s782 = scalar_lea.sflag [#allocation9], %s781
        %s783 = sand.u32 %s174, 1
        %s784 = smul.addr %s783, 8
        %s785 = scalar_lea.vmem [#allocation10], %s784
        // Predicated region
        $region97: #{tpu_custom_call.1} parent=79 // pred_check
          %p786 = pneg %p187
        $region98: #{tpu_custom_call.1} parent=79 // pred_check_branch
          %788 = sbr.rel (%p786) target = $region100
        $region99: #{tpu_custom_call.1} parent=79 // pred_region
          %789 = dma.done %s782, 128
        $region100: #{tpu_custom_call.1} parent=79 // pred_fallthru
          _
        %s790 = sand.u32 %s50, 1
        %s791 = scalar_lea.sflag [#allocation12], %s790
        %s792 = sand.u32 %s200, 1
        %s793 = smul.addr %s792, 8
        %s794 = scalar_lea.vmem [#allocation11], %s793
        // Predicated region
        $region101: #{tpu_custom_call.1} parent=79 // pred_check
          %p795 = pneg %p213
        $region102: #{tpu_custom_call.1} parent=79 // pred_check_branch
          %797 = sbr.rel (%p795) target = $region104
        $region103: #{tpu_custom_call.1} parent=79 // pred_region
          %798 = dma.done %s791, 128
        $region104: #{tpu_custom_call.1} parent=79 // pred_fallthru
          _
        %s799 = sand.u32 %s50, 1
        %s800 = scalar_lea.sflag [#allocation12], %s799
        %s801 = sand.u32 %s226, 1
        %s802 = smul.addr %s801, 8
        %s803 = scalar_lea.vmem [#allocation13], %s802
        // Predicated region
        $region105: #{tpu_custom_call.1} parent=79 // pred_check
          %p804 = pneg %p239
        $region106: #{tpu_custom_call.1} parent=79 // pred_check_branch
          %806 = sbr.rel (%p804) target = $region108
        $region107: #{tpu_custom_call.1} parent=79 // pred_region
          %807 = dma.done %s800, 128
        $region108: #{tpu_custom_call.1} parent=79 // pred_fallthru
          _
        %s808 = sand.u32 %s50, 1
        %s809 = scalar_lea.sflag [#allocation15], %s808
        %s810 = sand.u32 %s252, 1
        %s811 = smul.addr %s810, 8
        %s812 = scalar_lea.vmem [#allocation14], %s811
        // Predicated region
        $region109: #{tpu_custom_call.1} parent=79 // pred_check
          %p813 = pneg %p265
        $region110: #{tpu_custom_call.1} parent=79 // pred_check_branch
          %815 = sbr.rel (%p813) target = $region112
        $region111: #{tpu_custom_call.1} parent=79 // pred_region
          %816 = dma.done %s809, 128
        $region112: #{tpu_custom_call.1} parent=79 // pred_fallthru
          _
        %s817 = sand.u32 %s50, 1
        %s818 = scalar_lea.sflag [#allocation15], %s817
        %s819 = sand.u32 %s278, 1
        %s820 = smul.addr %s819, 8
        %s821 = scalar_lea.vmem [#allocation16], %s820
        // Predicated region
        $region113: #{tpu_custom_call.1} parent=79 // pred_check
          %p822 = pneg %p291
        $region114: #{tpu_custom_call.1} parent=79 // pred_check_branch
          %824 = sbr.rel (%p822) target = $region116
        $region115: #{tpu_custom_call.1} parent=79 // pred_region
          %825 = dma.done %s818, 128
        $region116: #{tpu_custom_call.1} parent=79 // pred_fallthru
          _
        %s826 = sand.u32 %s50, 1
        %s827 = scalar_lea.sflag [#allocation18], %s826
        %s828 = sand.u32 %s330, 1
        %s829 = smul.addr %s828, 8
        %s830 = scalar_lea.vmem [#allocation17], %s829
        // Predicated region
        $region117: #{tpu_custom_call.1} parent=79 // pred_check
          %p831 = pneg %p343
        $region118: #{tpu_custom_call.1} parent=79 // pred_check_branch
          %833 = sbr.rel (%p831) target = $region120
        $region119: #{tpu_custom_call.1} parent=79 // pred_region
          %834 = dma.done %s827, 128
        $region120: #{tpu_custom_call.1} parent=79 // pred_fallthru
          _
        %s835 = sand.u32 %s50, 1
        %s836 = scalar_lea.sflag [#allocation18], %s835
        %s837 = sand.u32 %s356, 1
        %s838 = smul.addr %s837, 8
        %s839 = scalar_lea.vmem [#allocation19], %s838
        // Predicated region
        $region121: #{tpu_custom_call.1} parent=79 // pred_check
          %p840 = pneg %p369
        $region122: #{tpu_custom_call.1} parent=79 // pred_check_branch
          %842 = sbr.rel (%p840) target = $region124
        $region123: #{tpu_custom_call.1} parent=79 // pred_region
          %843 = dma.done %s836, 128
        $region124: #{tpu_custom_call.1} parent=79 // pred_fallthru
          _
        %s844 = sand.u32 %s50, 1
        %s845 = scalar_lea.sflag [#allocation21], %s844
        %s846 = sand.u32 %s382, 1
        %s847 = smul.addr %s846, 8
        %s848 = scalar_lea.vmem [#allocation20], %s847
        // Predicated region
        $region125: #{tpu_custom_call.1} parent=79 // pred_check
          %p849 = pneg %p395
        $region126: #{tpu_custom_call.1} parent=79 // pred_check_branch
          %851 = sbr.rel (%p849) target = $region128
        $region127: #{tpu_custom_call.1} parent=79 // pred_region
          %852 = dma.done %s845, 128
        $region128: #{tpu_custom_call.1} parent=79 // pred_fallthru
          _
        // Predicated region
        $region129: #{tpu_custom_call.1} parent=79 // pred_check
          %p853 = pneg %p421
        $region130: #{tpu_custom_call.1} parent=79 // pred_check_branch
          %855 = sbr.rel (%p853) target = $region132
        $region131: #{tpu_custom_call.1} parent=79 // pred_region
          %856 = dma.done [#allocation21], 3328
        $region132: #{tpu_custom_call.1} parent=79 // pred_fallthru
          _
        %s857 = sand.u32 %s70, 1
        %s858 = scalar_lea.sflag [#allocation3], %s857
        %s859 = sand.u32 %s70, 1
        %s860 = smul.addr %s859, 8
        %s861 = scalar_lea.vmem [#allocation2], %s860
        %p862 = pneg %p83
        %p863 = pneg %p80
        %s864 = sand.u32 %s50, 1
        %s865 = scalar_lea.sflag [#allocation6], %s864
        %s866 = sand.u32 %s96, 1
        %s867 = smul.addr %s866, 8
        %s868 = scalar_lea.vmem [#allocation5], %s867
        %p869 = pneg %p109
        %p870 = pneg %p106
        %s871 = sand.u32 %s50, 1
        %s872 = scalar_lea.sflag [#allocation6], %s871
        %s873 = sand.u32 %s122, 1
        %s874 = smul.addr %s873, 8
        %s875 = scalar_lea.vmem [#allocation7], %s874
        %p876 = pneg %p135
        %p877 = pneg %p132
        %s878 = sand.u32 %s50, 1
        %s879 = scalar_lea.sflag [#allocation9], %s878
        %s880 = sand.u32 %s148, 1
        %s881 = smul.addr %s880, 8
        %s882 = scalar_lea.vmem [#allocation8], %s881
        %p883 = pneg %p161
        %p884 = pneg %p158
        %s885 = sand.u32 %s50, 1
        %s886 = scalar_lea.sflag [#allocation9], %s885
        %s887 = sand.u32 %s174, 1
        %s888 = smul.addr %s887, 8
        %s889 = scalar_lea.vmem [#allocation10], %s888
        %p890 = pneg %p187
        %p891 = pneg %p184
        %s892 = sand.u32 %s50, 1
        %s893 = scalar_lea.sflag [#allocation12], %s892
        %s894 = sand.u32 %s200, 1
        %s895 = smul.addr %s894, 8
        %s896 = scalar_lea.vmem [#allocation11], %s895
        %p897 = pneg %p213
        %p898 = pneg %p210
        %s899 = sand.u32 %s50, 1
        %s900 = scalar_lea.sflag [#allocation12], %s899
        %s901 = sand.u32 %s226, 1
        %s902 = smul.addr %s901, 8
        %s903 = scalar_lea.vmem [#allocation13], %s902
        %p904 = pneg %p239
        %p905 = pneg %p236
        %s906 = sand.u32 %s50, 1
        %s907 = scalar_lea.sflag [#allocation15], %s906
        %s908 = sand.u32 %s252, 1
        %s909 = smul.addr %s908, 8
        %s910 = scalar_lea.vmem [#allocation14], %s909
        %p911 = pneg %p265
        %p912 = pneg %p262
        %s913 = sand.u32 %s50, 1
        %s914 = scalar_lea.sflag [#allocation15], %s913
        %s915 = sand.u32 %s278, 1
        %s916 = smul.addr %s915, 8
        %s917 = scalar_lea.vmem [#allocation16], %s916
        %p918 = pneg %p291
        %p919 = pneg %p288
        %p920 = scmp.lt.s32.totalorder %s55, 1
        %s921 = scalar_select %p920, %s55, 1
        %s922 = smul.addr %s921, 8
        %s923 = scalar_lea.vmem %s9, %s922
        %p924 = pneg %p317
        %p925 = pneg %p314
        %s926 = sand.u32 %s50, 1
        %s927 = scalar_lea.sflag [#allocation18], %s926
        %s928 = sand.u32 %s330, 1
        %s929 = smul.addr %s928, 8
        %s930 = scalar_lea.vmem [#allocation17], %s929
        %p931 = pneg %p343
        %p932 = pneg %p340
        %s933 = sand.u32 %s50, 1
        %s934 = scalar_lea.sflag [#allocation18], %s933
        %s935 = sand.u32 %s356, 1
        %s936 = smul.addr %s935, 8
        %s937 = scalar_lea.vmem [#allocation19], %s936
        %p938 = pneg %p369
        %p939 = pneg %p366
        %s940 = sand.u32 %s50, 1
        %s941 = scalar_lea.sflag [#allocation21], %s940
        %s942 = sand.u32 %s382, 1
        %s943 = smul.addr %s942, 8
        %s944 = scalar_lea.vmem [#allocation20], %s943
        %p945 = pneg %p395
        %p946 = pneg %p392
        %p947 = pneg %p421
        %p948 = pneg %p418
        %p949 = scmp.lt.s32.totalorder %s54, 0
        %s950 = scalar_select %p949, %s54, 0
        %s951 = scalar_lea.vmem %s14, %s950
        %p952 = pneg %p447
        %p953 = pneg %p444
        %p954 = pneg %p475
        %p955 = pneg %p472
        %s956 = sand.u32 %s462, 1
        %s957 = scalar_lea.sflag [#allocation4], %s956
        %s958 = sand.u32 %s462, 1
        %s959 = smul.addr %s958, 8
        %s960 = scalar_lea.vmem [#allocation23], %s959
        %p961 = scmp.lt.s32.totalorder %s55, 1
        %s962 = scalar_select %p961, %s55, 1
        %s963 = smul.addr %s962, 8
        %s964 = scalar_lea.vmem %s9, %s963
        %p965 = scmp.lt.s32.totalorder %s54, 0
        %s966 = scalar_select %p965, %s54, 0
        %s967 = scalar_lea.vmem %s14, %s966
        %v969 = vld [vmem:[%s967] sm:$0x1]
        %v971 = vlaneseq
        %v972 = vshrl.u32 %v971, 7
        %v973 = vsub.s32 0, %v972
        %v974 = vrot.slane %v969, %v973
        %v976 = vld [vmem:[%s749] sm:$0xff]
        %v977 = vpack.c.bf16 %v976, %v976
        %v978 = vld [vmem:[#allocation22] sm:$0xf]
        %v979 = vld [vmem:[#allocation22 + $0x4] sm:$0xf]
        %v980 = vld [vmem:[#allocation22 + $0x8] sm:$0xf]
        %v981 = vld [vmem:[#allocation22 + $0xc] sm:$0xf]
        %v986 = vunpack.c.l.b16 %v978
        %v987 = vunpack.c.l.b16 %v979
        %v988 = vunpack.c.l.b16 %v980
        %v989 = vunpack.c.l.b16 %v981
        %v990 = vpack.c.b16 %v987, %v986
        %v991 = vpack.c.b16 %v989, %v988
        %vm994 = vcmask 261120
        %v996 = vsel %vm994, %v977, 0
        %998 = vmatprep.subr.bf16.mxu0 0
        %999 = vmatpush1.bf16.msra.mxu0 0
        %1000 = vmatprep.subr.bf16.mxu0 0
        %1001 = vmatpush1.bf16.msra.mxu0 0
        %1002 = vmatprep.subr.bf16.mxu0 0
        %1003 = vmatpush1.bf16.msra.mxu0 0
        %1004 = vmatprep.subr.bf16.mxu0 0
        %1005 = vmatpush1.bf16.msra.mxu0 0
        %1006 = vmatprep.subr.bf16.mxu0 0
        %1007 = vmatpush1.bf16.msra.mxu0 0
        %1008 = vmatprep.subr.bf16.mxu0 0
        %1009 = vmatpush1.bf16.msra.mxu0 0
        %1010 = vmatprep.subr.bf16.mxu0 0
        %1011 = vmatpush1.bf16.msra.mxu0 %v991
        %1012 = vmatprep.subr.bf16.mxu0 0
        %1013 = vmatpush1.bf16.msra.mxu0 %v990
        %1014 = vmatprep.subr.bf16.mxu0 0
        %1015 = vmatpush2.bf16.msra.mxu0 0
        %1016 = vmatprep.subr.bf16.mxu0 0
        %1017 = vmatpush2.bf16.msra.mxu0 0
        %1018 = vmatprep.subr.bf16.mxu0 0
        %1019 = vmatpush2.bf16.msra.mxu0 0
        %1020 = vmatprep.subr.bf16.mxu0 0
        %1021 = vmatpush2.bf16.msra.mxu0 0
        %1022 = vmatprep.subr.bf16.mxu0 0
        %1023 = vmatpush2.bf16.msra.mxu0 0
        %1024 = vmatprep.subr.bf16.mxu0 0
        %1025 = vmatpush2.bf16.msra.mxu0 0
        %1026 = vmatprep.subr.bf16.mxu0 0
        %1027 = vmatpush2.bf16.msra.mxu0 0
        %1028 = vmatprep.subr.bf16.mxu0 0
        %1029 = vmatpush2.bf16.msra.mxu0 0
        %1030 = vmatprep.mubr.bf16.mxu0 0
        %1031 = vmatmul.mubr.bf16.gmra.mxu0 %v996
        %v1032 = vpop.f32.mrf.mxu0
        %v1033 = vadd.f32 0.0, %v1032
        %v1034 = vpop.f32.mrf.mxu0
        %v1035 = vpop.f32.mrf.mxu0
        %v1036 = vpop.f32.mrf.mxu0
        %1037 = vdwg.mxu0
        %v1038 = vadd.f32 %v974, %v1033
        %v1039 = vld [vmem:[%s758] sm:$0xff]
        %v1040 = vpack.c.bf16 %v1039, %v1039
        %v1041 = vld [vmem:[#allocation22 + $0x10] sm:$0xf]
        %v1042 = vld [vmem:[#allocation22 + $0x14] sm:$0xf]
        %v1043 = vld [vmem:[#allocation22 + $0x18] sm:$0xf]
        %v1044 = vld [vmem:[#allocation22 + $0x1c] sm:$0xf]
        %v1049 = vunpack.c.l.b16 %v1041
        %v1050 = vunpack.c.l.b16 %v1042
        %v1051 = vunpack.c.l.b16 %v1043
        %v1052 = vunpack.c.l.b16 %v1044
        %v1053 = vpack.c.b16 %v1050, %v1049
        %v1054 = vpack.c.b16 %v1052, %v1051
        %v1058 = vsel %vm994, %v1040, 0
        %1060 = vmatprep.subr.bf16.mxu0 0
        %1061 = vmatpush1.bf16.msra.mxu0 0
        %1062 = vmatprep.subr.bf16.mxu0 0
        %1063 = vmatpush1.bf16.msra.mxu0 0
        %1064 = vmatprep.subr.bf16.mxu0 0
        %1065 = vmatpush1.bf16.msra.mxu0 0
        %1066 = vmatprep.subr.bf16.mxu0 0
        %1067 = vmatpush1.bf16.msra.mxu0 0
        %1068 = vmatprep.subr.bf16.mxu0 0
        %1069 = vmatpush1.bf16.msra.mxu0 0
        %1070 = vmatprep.subr.bf16.mxu0 0
        %1071 = vmatpush1.bf16.msra.mxu0 0
        %1072 = vmatprep.subr.bf16.mxu0 0
        %1073 = vmatpush1.bf16.msra.mxu0 %v1054
        %1074 = vmatprep.subr.bf16.mxu0 0
        %1075 = vmatpush1.bf16.msra.mxu0 %v1053
        %1076 = vmatprep.subr.bf16.mxu0 0
        %1077 = vmatpush2.bf16.msra.mxu0 0
        %1078 = vmatprep.subr.bf16.mxu0 0
        %1079 = vmatpush2.bf16.msra.mxu0 0
        %1080 = vmatprep.subr.bf16.mxu0 0
        %1081 = vmatpush2.bf16.msra.mxu0 0
        %1082 = vmatprep.subr.bf16.mxu0 0
        %1083 = vmatpush2.bf16.msra.mxu0 0
        %1084 = vmatprep.subr.bf16.mxu0 0
        %1085 = vmatpush2.bf16.msra.mxu0 0
        %1086 = vmatprep.subr.bf16.mxu0 0
        %1087 = vmatpush2.bf16.msra.mxu0 0
        %1088 = vmatprep.subr.bf16.mxu0 0
        %1089 = vmatpush2.bf16.msra.mxu0 0
        %1090 = vmatprep.subr.bf16.mxu0 0
        %1091 = vmatpush2.bf16.msra.mxu0 0
        %1092 = vmatprep.mubr.bf16.mxu0 0
        %1093 = vmatmul.mubr.bf16.gmra.mxu0 %v1058
        %v1094 = vpop.f32.mrf.mxu0
        %v1095 = vadd.f32 0.0, %v1094
        %v1096 = vpop.f32.mrf.mxu0
        %v1097 = vpop.f32.mrf.mxu0
        %v1098 = vpop.f32.mrf.mxu0
        %1099 = vdwg.mxu0
        %v1100 = vadd.f32 %v1038, %v1095
        %v1101 = vld [vmem:[%s767] sm:$0xff]
        %v1102 = vpack.c.bf16 %v1101, %v1101
        %v1103 = vld [vmem:[#allocation22 + $0x20] sm:$0xf]
        %v1104 = vld [vmem:[#allocation22 + $0x24] sm:$0xf]
        %v1105 = vld [vmem:[#allocation22 + $0x28] sm:$0xf]
        %v1106 = vld [vmem:[#allocation22 + $0x2c] sm:$0xf]
        %v1111 = vunpack.c.l.b16 %v1103
        %v1112 = vunpack.c.l.b16 %v1104
        %v1113 = vunpack.c.l.b16 %v1105
        %v1114 = vunpack.c.l.b16 %v1106
        %v1115 = vpack.c.b16 %v1112, %v1111
        %v1116 = vpack.c.b16 %v1114, %v1113
        %v1120 = vsel %vm994, %v1102, 0
        %1122 = vmatprep.subr.bf16.mxu0 0
        %1123 = vmatpush1.bf16.msra.mxu0 0
        %1124 = vmatprep.subr.bf16.mxu0 0
        %1125 = vmatpush1.bf16.msra.mxu0 0
        %1126 = vmatprep.subr.bf16.mxu0 0
        %1127 = vmatpush1.bf16.msra.mxu0 0
        %1128 = vmatprep.subr.bf16.mxu0 0
        %1129 = vmatpush1.bf16.msra.mxu0 0
        %1130 = vmatprep.subr.bf16.mxu0 0
        %1131 = vmatpush1.bf16.msra.mxu0 0
        %1132 = vmatprep.subr.bf16.mxu0 0
        %1133 = vmatpush1.bf16.msra.mxu0 0
        %1134 = vmatprep.subr.bf16.mxu0 0
        %1135 = vmatpush1.bf16.msra.mxu0 %v1116
        %1136 = vmatprep.subr.bf16.mxu0 0
        %1137 = vmatpush1.bf16.msra.mxu0 %v1115
        %1138 = vmatprep.subr.bf16.mxu0 0
        %1139 = vmatpush2.bf16.msra.mxu0 0
        %1140 = vmatprep.subr.bf16.mxu0 0
        %1141 = vmatpush2.bf16.msra.mxu0 0
        %1142 = vmatprep.subr.bf16.mxu0 0
        %1143 = vmatpush2.bf16.msra.mxu0 0
        %1144 = vmatprep.subr.bf16.mxu0 0
        %1145 = vmatpush2.bf16.msra.mxu0 0
        %1146 = vmatprep.subr.bf16.mxu0 0
        %1147 = vmatpush2.bf16.msra.mxu0 0
        %1148 = vmatprep.subr.bf16.mxu0 0
        %1149 = vmatpush2.bf16.msra.mxu0 0
        %1150 = vmatprep.subr.bf16.mxu0 0
        %1151 = vmatpush2.bf16.msra.mxu0 0
        %1152 = vmatprep.subr.bf16.mxu0 0
        %1153 = vmatpush2.bf16.msra.mxu0 0
        %1154 = vmatprep.mubr.bf16.mxu0 0
        %1155 = vmatmul.mubr.bf16.gmra.mxu0 %v1120
        %v1156 = vpop.f32.mrf.mxu0
        %v1157 = vadd.f32 0.0, %v1156
        %v1158 = vpop.f32.mrf.mxu0
        %v1159 = vpop.f32.mrf.mxu0
        %v1160 = vpop.f32.mrf.mxu0
        %1161 = vdwg.mxu0
        %v1162 = vadd.f32 %v1100, %v1157
        %v1163 = vld [vmem:[%s776] sm:$0xff]
        %v1164 = vpack.c.bf16 %v1163, %v1163
        %v1165 = vld [vmem:[#allocation22 + $0x30] sm:$0xf]
        %v1166 = vld [vmem:[#allocation22 + $0x34] sm:$0xf]
        %v1167 = vld [vmem:[#allocation22 + $0x38] sm:$0xf]
        %v1168 = vld [vmem:[#allocation22 + $0x3c] sm:$0xf]
        %v1173 = vunpack.c.l.b16 %v1165
        %v1174 = vunpack.c.l.b16 %v1166
        %v1175 = vunpack.c.l.b16 %v1167
        %v1176 = vunpack.c.l.b16 %v1168
        %v1177 = vpack.c.b16 %v1174, %v1173
        %v1178 = vpack.c.b16 %v1176, %v1175
        %v1182 = vsel %vm994, %v1164, 0
        %1184 = vmatprep.subr.bf16.mxu0 0
        %1185 = vmatpush1.bf16.msra.mxu0 0
        %1186 = vmatprep.subr.bf16.mxu0 0
        %1187 = vmatpush1.bf16.msra.mxu0 0
        %1188 = vmatprep.subr.bf16.mxu0 0
        %1189 = vmatpush1.bf16.msra.mxu0 0
        %1190 = vmatprep.subr.bf16.mxu0 0
        %1191 = vmatpush1.bf16.msra.mxu0 0
        %1192 = vmatprep.subr.bf16.mxu0 0
        %1193 = vmatpush1.bf16.msra.mxu0 0
        %1194 = vmatprep.subr.bf16.mxu0 0
        %1195 = vmatpush1.bf16.msra.mxu0 0
        %1196 = vmatprep.subr.bf16.mxu0 0
        %1197 = vmatpush1.bf16.msra.mxu0 %v1178
        %1198 = vmatprep.subr.bf16.mxu0 0
        %1199 = vmatpush1.bf16.msra.mxu0 %v1177
        %1200 = vmatprep.subr.bf16.mxu0 0
        %1201 = vmatpush2.bf16.msra.mxu0 0
        %1202 = vmatprep.subr.bf16.mxu0 0
        %1203 = vmatpush2.bf16.msra.mxu0 0
        %1204 = vmatprep.subr.bf16.mxu0 0
        %1205 = vmatpush2.bf16.msra.mxu0 0
        %1206 = vmatprep.subr.bf16.mxu0 0
        %1207 = vmatpush2.bf16.msra.mxu0 0
        %1208 = vmatprep.subr.bf16.mxu0 0
        %1209 = vmatpush2.bf16.msra.mxu0 0
        %1210 = vmatprep.subr.bf16.mxu0 0
        %1211 = vmatpush2.bf16.msra.mxu0 0
        %1212 = vmatprep.subr.bf16.mxu0 0
        %1213 = vmatpush2.bf16.msra.mxu0 0
        %1214 = vmatprep.subr.bf16.mxu0 0
        %1215 = vmatpush2.bf16.msra.mxu0 0
        %1216 = vmatprep.mubr.bf16.mxu0 0
        %1217 = vmatmul.mubr.bf16.gmra.mxu0 %v1182
        %v1218 = vpop.f32.mrf.mxu0
        %v1219 = vadd.f32 0.0, %v1218
        %v1220 = vpop.f32.mrf.mxu0
        %v1221 = vpop.f32.mrf.mxu0
        %v1222 = vpop.f32.mrf.mxu0
        %1223 = vdwg.mxu0
        %v1224 = vadd.f32 %v1162, %v1219
        %v1225 = vld [vmem:[%s785] sm:$0xff]
        %v1226 = vpack.c.bf16 %v1225, %v1225
        %v1227 = vld [vmem:[#allocation22 + $0x40] sm:$0xf]
        %v1228 = vld [vmem:[#allocation22 + $0x44] sm:$0xf]
        %v1229 = vld [vmem:[#allocation22 + $0x48] sm:$0xf]
        %v1230 = vld [vmem:[#allocation22 + $0x4c] sm:$0xf]
        %v1235 = vunpack.c.l.b16 %v1227
        %v1236 = vunpack.c.l.b16 %v1228
        %v1237 = vunpack.c.l.b16 %v1229
        %v1238 = vunpack.c.l.b16 %v1230
        %v1239 = vpack.c.b16 %v1236, %v1235
        %v1240 = vpack.c.b16 %v1238, %v1237
        %v1244 = vsel %vm994, %v1226, 0
        %1246 = vmatprep.subr.bf16.mxu0 0
        %1247 = vmatpush1.bf16.msra.mxu0 0
        %1248 = vmatprep.subr.bf16.mxu0 0
        %1249 = vmatpush1.bf16.msra.mxu0 0
        %1250 = vmatprep.subr.bf16.mxu0 0
        %1251 = vmatpush1.bf16.msra.mxu0 0
        %1252 = vmatprep.subr.bf16.mxu0 0
        %1253 = vmatpush1.bf16.msra.mxu0 0
        %1254 = vmatprep.subr.bf16.mxu0 0
        %1255 = vmatpush1.bf16.msra.mxu0 0
        %1256 = vmatprep.subr.bf16.mxu0 0
        %1257 = vmatpush1.bf16.msra.mxu0 0
        %1258 = vmatprep.subr.bf16.mxu0 0
        %1259 = vmatpush1.bf16.msra.mxu0 %v1240
        %1260 = vmatprep.subr.bf16.mxu0 0
        %1261 = vmatpush1.bf16.msra.mxu0 %v1239
        %1262 = vmatprep.subr.bf16.mxu0 0
        %1263 = vmatpush2.bf16.msra.mxu0 0
        %1264 = vmatprep.subr.bf16.mxu0 0
        %1265 = vmatpush2.bf16.msra.mxu0 0
        %1266 = vmatprep.subr.bf16.mxu0 0
        %1267 = vmatpush2.bf16.msra.mxu0 0
        %1268 = vmatprep.subr.bf16.mxu0 0
        %1269 = vmatpush2.bf16.msra.mxu0 0
        %1270 = vmatprep.subr.bf16.mxu0 0
        %1271 = vmatpush2.bf16.msra.mxu0 0
        %1272 = vmatprep.subr.bf16.mxu0 0
        %1273 = vmatpush2.bf16.msra.mxu0 0
        %1274 = vmatprep.subr.bf16.mxu0 0
        %1275 = vmatpush2.bf16.msra.mxu0 0
        %1276 = vmatprep.subr.bf16.mxu0 0
        %1277 = vmatpush2.bf16.msra.mxu0 0
        %1278 = vmatprep.mubr.bf16.mxu0 0
        %1279 = vmatmul.mubr.bf16.gmra.mxu0 %v1244
        %v1280 = vpop.f32.mrf.mxu0
        %v1281 = vadd.f32 0.0, %v1280
        %v1282 = vpop.f32.mrf.mxu0
        %v1283 = vpop.f32.mrf.mxu0
        %v1284 = vpop.f32.mrf.mxu0
        %1285 = vdwg.mxu0
        %v1286 = vadd.f32 %v1224, %v1281
        %v1287 = vld [vmem:[%s794] sm:$0xff]
        %v1288 = vpack.c.bf16 %v1287, %v1287
        %v1289 = vld [vmem:[#allocation22 + $0x50] sm:$0xf]
        %v1290 = vld [vmem:[#allocation22 + $0x54] sm:$0xf]
        %v1291 = vld [vmem:[#allocation22 + $0x58] sm:$0xf]
        %v1292 = vld [vmem:[#allocation22 + $0x5c] sm:$0xf]
        %v1297 = vunpack.c.l.b16 %v1289
        %v1298 = vunpack.c.l.b16 %v1290
        %v1299 = vunpack.c.l.b16 %v1291
        %v1300 = vunpack.c.l.b16 %v1292
        %v1301 = vpack.c.b16 %v1298, %v1297
        %v1302 = vpack.c.b16 %v1300, %v1299
        %v1306 = vsel %vm994, %v1288, 0
        %1308 = vmatprep.subr.bf16.mxu0 0
        %1309 = vmatpush1.bf16.msra.mxu0 0
        %1310 = vmatprep.subr.bf16.mxu0 0
        %1311 = vmatpush1.bf16.msra.mxu0 0
        %1312 = vmatprep.subr.bf16.mxu0 0
        %1313 = vmatpush1.bf16.msra.mxu0 0
        %1314 = vmatprep.subr.bf16.mxu0 0
        %1315 = vmatpush1.bf16.msra.mxu0 0
        %1316 = vmatprep.subr.bf16.mxu0 0
        %1317 = vmatpush1.bf16.msra.mxu0 0
        %1318 = vmatprep.subr.bf16.mxu0 0
        %1319 = vmatpush1.bf16.msra.mxu0 0
        %1320 = vmatprep.subr.bf16.mxu0 0
        %1321 = vmatpush1.bf16.msra.mxu0 %v1302
        %1322 = vmatprep.subr.bf16.mxu0 0
        %1323 = vmatpush1.bf16.msra.mxu0 %v1301
        %1324 = vmatprep.subr.bf16.mxu0 0
        %1325 = vmatpush2.bf16.msra.mxu0 0
        %1326 = vmatprep.subr.bf16.mxu0 0
        %1327 = vmatpush2.bf16.msra.mxu0 0
        %1328 = vmatprep.subr.bf16.mxu0 0
        %1329 = vmatpush2.bf16.msra.mxu0 0
        %1330 = vmatprep.subr.bf16.mxu0 0
        %1331 = vmatpush2.bf16.msra.mxu0 0
        %1332 = vmatprep.subr.bf16.mxu0 0
        %1333 = vmatpush2.bf16.msra.mxu0 0
        %1334 = vmatprep.subr.bf16.mxu0 0
        %1335 = vmatpush2.bf16.msra.mxu0 0
        %1336 = vmatprep.subr.bf16.mxu0 0
        %1337 = vmatpush2.bf16.msra.mxu0 0
        %1338 = vmatprep.subr.bf16.mxu0 0
        %1339 = vmatpush2.bf16.msra.mxu0 0
        %1340 = vmatprep.mubr.bf16.mxu0 0
        %1341 = vmatmul.mubr.bf16.gmra.mxu0 %v1306
        %v1342 = vpop.f32.mrf.mxu0
        %v1343 = vadd.f32 0.0, %v1342
        %v1344 = vpop.f32.mrf.mxu0
        %v1345 = vpop.f32.mrf.mxu0
        %v1346 = vpop.f32.mrf.mxu0
        %1347 = vdwg.mxu0
        %v1348 = vadd.f32 %v1286, %v1343
        %v1349 = vld [vmem:[%s803] sm:$0xff]
        %v1350 = vpack.c.bf16 %v1349, %v1349
        %v1351 = vld [vmem:[#allocation22 + $0x60] sm:$0xf]
        %v1352 = vld [vmem:[#allocation22 + $0x64] sm:$0xf]
        %v1353 = vld [vmem:[#allocation22 + $0x68] sm:$0xf]
        %v1354 = vld [vmem:[#allocation22 + $0x6c] sm:$0xf]
        %v1359 = vunpack.c.l.b16 %v1351
        %v1360 = vunpack.c.l.b16 %v1352
        %v1361 = vunpack.c.l.b16 %v1353
        %v1362 = vunpack.c.l.b16 %v1354
        %v1363 = vpack.c.b16 %v1360, %v1359
        %v1364 = vpack.c.b16 %v1362, %v1361
        %v1368 = vsel %vm994, %v1350, 0
        %1370 = vmatprep.subr.bf16.mxu0 0
        %1371 = vmatpush1.bf16.msra.mxu0 0
        %1372 = vmatprep.subr.bf16.mxu0 0
        %1373 = vmatpush1.bf16.msra.mxu0 0
        %1374 = vmatprep.subr.bf16.mxu0 0
        %1375 = vmatpush1.bf16.msra.mxu0 0
        %1376 = vmatprep.subr.bf16.mxu0 0
        %1377 = vmatpush1.bf16.msra.mxu0 0
        %1378 = vmatprep.subr.bf16.mxu0 0
        %1379 = vmatpush1.bf16.msra.mxu0 0
        %1380 = vmatprep.subr.bf16.mxu0 0
        %1381 = vmatpush1.bf16.msra.mxu0 0
        %1382 = vmatprep.subr.bf16.mxu0 0
        %1383 = vmatpush1.bf16.msra.mxu0 %v1364
        %1384 = vmatprep.subr.bf16.mxu0 0
        %1385 = vmatpush1.bf16.msra.mxu0 %v1363
        %1386 = vmatprep.subr.bf16.mxu0 0
        %1387 = vmatpush2.bf16.msra.mxu0 0
        %1388 = vmatprep.subr.bf16.mxu0 0
        %1389 = vmatpush2.bf16.msra.mxu0 0
        %1390 = vmatprep.subr.bf16.mxu0 0
        %1391 = vmatpush2.bf16.msra.mxu0 0
        %1392 = vmatprep.subr.bf16.mxu0 0
        %1393 = vmatpush2.bf16.msra.mxu0 0
        %1394 = vmatprep.subr.bf16.mxu0 0
        %1395 = vmatpush2.bf16.msra.mxu0 0
        %1396 = vmatprep.subr.bf16.mxu0 0
        %1397 = vmatpush2.bf16.msra.mxu0 0
        %1398 = vmatprep.subr.bf16.mxu0 0
        %1399 = vmatpush2.bf16.msra.mxu0 0
        %1400 = vmatprep.subr.bf16.mxu0 0
        %1401 = vmatpush2.bf16.msra.mxu0 0
        %1402 = vmatprep.mubr.bf16.mxu0 0
        %1403 = vmatmul.mubr.bf16.gmra.mxu0 %v1368
        %v1404 = vpop.f32.mrf.mxu0
        %v1405 = vadd.f32 0.0, %v1404
        %v1406 = vpop.f32.mrf.mxu0
        %v1407 = vpop.f32.mrf.mxu0
        %v1408 = vpop.f32.mrf.mxu0
        %1409 = vdwg.mxu0
        %v1410 = vadd.f32 %v1348, %v1405
        %v1411 = vld [vmem:[%s812] sm:$0xff]
        %v1412 = vpack.c.bf16 %v1411, %v1411
        %v1413 = vld [vmem:[#allocation22 + $0x70] sm:$0xf]
        %v1414 = vld [vmem:[#allocation22 + $0x74] sm:$0xf]
        %v1415 = vld [vmem:[#allocation22 + $0x78] sm:$0xf]
        %v1416 = vld [vmem:[#allocation22 + $0x7c] sm:$0xf]
        %v1421 = vunpack.c.l.b16 %v1413
        %v1422 = vunpack.c.l.b16 %v1414
        %v1423 = vunpack.c.l.b16 %v1415
        %v1424 = vunpack.c.l.b16 %v1416
        %v1425 = vpack.c.b16 %v1422, %v1421
        %v1426 = vpack.c.b16 %v1424, %v1423
        %v1430 = vsel %vm994, %v1412, 0
        %1432 = vmatprep.subr.bf16.mxu0 0
        %1433 = vmatpush1.bf16.msra.mxu0 0
        %1434 = vmatprep.subr.bf16.mxu0 0
        %1435 = vmatpush1.bf16.msra.mxu0 0
        %1436 = vmatprep.subr.bf16.mxu0 0
        %1437 = vmatpush1.bf16.msra.mxu0 0
        %1438 = vmatprep.subr.bf16.mxu0 0
        %1439 = vmatpush1.bf16.msra.mxu0 0
        %1440 = vmatprep.subr.bf16.mxu0 0
        %1441 = vmatpush1.bf16.msra.mxu0 0
        %1442 = vmatprep.subr.bf16.mxu0 0
        %1443 = vmatpush1.bf16.msra.mxu0 0
        %1444 = vmatprep.subr.bf16.mxu0 0
        %1445 = vmatpush1.bf16.msra.mxu0 %v1426
        %1446 = vmatprep.subr.bf16.mxu0 0
        %1447 = vmatpush1.bf16.msra.mxu0 %v1425
        %1448 = vmatprep.subr.bf16.mxu0 0
        %1449 = vmatpush2.bf16.msra.mxu0 0
        %1450 = vmatprep.subr.bf16.mxu0 0
        %1451 = vmatpush2.bf16.msra.mxu0 0
        %1452 = vmatprep.subr.bf16.mxu0 0
        %1453 = vmatpush2.bf16.msra.mxu0 0
        %1454 = vmatprep.subr.bf16.mxu0 0
        %1455 = vmatpush2.bf16.msra.mxu0 0
        %1456 = vmatprep.subr.bf16.mxu0 0
        %1457 = vmatpush2.bf16.msra.mxu0 0
        %1458 = vmatprep.subr.bf16.mxu0 0
        %1459 = vmatpush2.bf16.msra.mxu0 0
        %1460 = vmatprep.subr.bf16.mxu0 0
        %1461 = vmatpush2.bf16.msra.mxu0 0
        %1462 = vmatprep.subr.bf16.mxu0 0
        %1463 = vmatpush2.bf16.msra.mxu0 0
        %1464 = vmatprep.mubr.bf16.mxu0 0
        %1465 = vmatmul.mubr.bf16.gmra.mxu0 %v1430
        %v1466 = vpop.f32.mrf.mxu0
        %v1467 = vadd.f32 0.0, %v1466
        %v1468 = vpop.f32.mrf.mxu0
        %v1469 = vpop.f32.mrf.mxu0
        %v1470 = vpop.f32.mrf.mxu0
        %1471 = vdwg.mxu0
        %v1472 = vadd.f32 %v1410, %v1467
        %v1473 = vld [vmem:[%s821] sm:$0xff]
        %v1474 = vpack.c.bf16 %v1473, %v1473
        %v1475 = vld [vmem:[#allocation22 + $0x80] sm:$0xf]
        %v1476 = vld [vmem:[#allocation22 + $0x84] sm:$0xf]
        %v1477 = vld [vmem:[#allocation22 + $0x88] sm:$0xf]
        %v1478 = vld [vmem:[#allocation22 + $0x8c] sm:$0xf]
        %v1483 = vunpack.c.l.b16 %v1475
        %v1484 = vunpack.c.l.b16 %v1476
        %v1485 = vunpack.c.l.b16 %v1477
        %v1486 = vunpack.c.l.b16 %v1478
        %v1487 = vpack.c.b16 %v1484, %v1483
        %v1488 = vpack.c.b16 %v1486, %v1485
        %v1492 = vsel %vm994, %v1474, 0
        %1494 = vmatprep.subr.bf16.mxu0 0
        %1495 = vmatpush1.bf16.msra.mxu0 0
        %1496 = vmatprep.subr.bf16.mxu0 0
        %1497 = vmatpush1.bf16.msra.mxu0 0
        %1498 = vmatprep.subr.bf16.mxu0 0
        %1499 = vmatpush1.bf16.msra.mxu0 0
        %1500 = vmatprep.subr.bf16.mxu0 0
        %1501 = vmatpush1.bf16.msra.mxu0 0
        %1502 = vmatprep.subr.bf16.mxu0 0
        %1503 = vmatpush1.bf16.msra.mxu0 0
        %1504 = vmatprep.subr.bf16.mxu0 0
        %1505 = vmatpush1.bf16.msra.mxu0 0
        %1506 = vmatprep.subr.bf16.mxu0 0
        %1507 = vmatpush1.bf16.msra.mxu0 %v1488
        %1508 = vmatprep.subr.bf16.mxu0 0
        %1509 = vmatpush1.bf16.msra.mxu0 %v1487
        %1510 = vmatprep.subr.bf16.mxu0 0
        %1511 = vmatpush2.bf16.msra.mxu0 0
        %1512 = vmatprep.subr.bf16.mxu0 0
        %1513 = vmatpush2.bf16.msra.mxu0 0
        %1514 = vmatprep.subr.bf16.mxu0 0
        %1515 = vmatpush2.bf16.msra.mxu0 0
        %1516 = vmatprep.subr.bf16.mxu0 0
        %1517 = vmatpush2.bf16.msra.mxu0 0
        %1518 = vmatprep.subr.bf16.mxu0 0
        %1519 = vmatpush2.bf16.msra.mxu0 0
        %1520 = vmatprep.subr.bf16.mxu0 0
        %1521 = vmatpush2.bf16.msra.mxu0 0
        %1522 = vmatprep.subr.bf16.mxu0 0
        %1523 = vmatpush2.bf16.msra.mxu0 0
        %1524 = vmatprep.subr.bf16.mxu0 0
        %1525 = vmatpush2.bf16.msra.mxu0 0
        %1526 = vmatprep.mubr.bf16.mxu0 0
        %1527 = vmatmul.mubr.bf16.gmra.mxu0 %v1492
        %v1528 = vpop.f32.mrf.mxu0
        %v1529 = vadd.f32 0.0, %v1528
        %v1530 = vpop.f32.mrf.mxu0
        %v1531 = vpop.f32.mrf.mxu0
        %v1532 = vpop.f32.mrf.mxu0
        %1533 = vdwg.mxu0
        %v1534 = vadd.f32 %v1472, %v1529
        %v1535 = vld [vmem:[%s964] sm:$0xff]
        %v1536 = vpack.c.bf16 %v1535, %v1535
        %v1537 = vld [vmem:[#allocation22 + $0x90] sm:$0xf]
        %v1538 = vld [vmem:[#allocation22 + $0x94] sm:$0xf]
        %v1539 = vld [vmem:[#allocation22 + $0x98] sm:$0xf]
        %v1540 = vld [vmem:[#allocation22 + $0x9c] sm:$0xf]
        %v1545 = vunpack.c.l.b16 %v1537
        %v1546 = vunpack.c.l.b16 %v1538
        %v1547 = vunpack.c.l.b16 %v1539
        %v1548 = vunpack.c.l.b16 %v1540
        %v1549 = vpack.c.b16 %v1546, %v1545
        %v1550 = vpack.c.b16 %v1548, %v1547
        %v1554 = vsel %vm994, %v1536, 0
        %1556 = vmatprep.subr.bf16.mxu0 0
        %1557 = vmatpush1.bf16.msra.mxu0 0
        %1558 = vmatprep.subr.bf16.mxu0 0
        %1559 = vmatpush1.bf16.msra.mxu0 0
        %1560 = vmatprep.subr.bf16.mxu0 0
        %1561 = vmatpush1.bf16.msra.mxu0 0
        %1562 = vmatprep.subr.bf16.mxu0 0
        %1563 = vmatpush1.bf16.msra.mxu0 0
        %1564 = vmatprep.subr.bf16.mxu0 0
        %1565 = vmatpush1.bf16.msra.mxu0 0
        %1566 = vmatprep.subr.bf16.mxu0 0
        %1567 = vmatpush1.bf16.msra.mxu0 0
        %1568 = vmatprep.subr.bf16.mxu0 0
        %1569 = vmatpush1.bf16.msra.mxu0 %v1550
        %1570 = vmatprep.subr.bf16.mxu0 0
        %1571 = vmatpush1.bf16.msra.mxu0 %v1549
        %1572 = vmatprep.subr.bf16.mxu0 0
        %1573 = vmatpush2.bf16.msra.mxu0 0
        %1574 = vmatprep.subr.bf16.mxu0 0
        %1575 = vmatpush2.bf16.msra.mxu0 0
        %1576 = vmatprep.subr.bf16.mxu0 0
        %1577 = vmatpush2.bf16.msra.mxu0 0
        %1578 = vmatprep.subr.bf16.mxu0 0
        %1579 = vmatpush2.bf16.msra.mxu0 0
        %1580 = vmatprep.subr.bf16.mxu0 0
        %1581 = vmatpush2.bf16.msra.mxu0 0
        %1582 = vmatprep.subr.bf16.mxu0 0
        %1583 = vmatpush2.bf16.msra.mxu0 0
        %1584 = vmatprep.subr.bf16.mxu0 0
        %1585 = vmatpush2.bf16.msra.mxu0 0
        %1586 = vmatprep.subr.bf16.mxu0 0
        %1587 = vmatpush2.bf16.msra.mxu0 0
        %1588 = vmatprep.mubr.bf16.mxu0 0
        %1589 = vmatmul.mubr.bf16.gmra.mxu0 %v1554
        %v1590 = vpop.f32.mrf.mxu0
        %v1591 = vadd.f32 0.0, %v1590
        %v1592 = vpop.f32.mrf.mxu0
        %v1593 = vpop.f32.mrf.mxu0
        %v1594 = vpop.f32.mrf.mxu0
        %1595 = vdwg.mxu0
        %v1596 = vadd.f32 %v1534, %v1591
        %v1597 = vld [vmem:[%s830] sm:$0xff]
        %v1598 = vpack.c.bf16 %v1597, %v1597
        %v1599 = vld [vmem:[#allocation22 + $0xa0] sm:$0xf]
        %v1600 = vld [vmem:[#allocation22 + $0xa4] sm:$0xf]
        %v1601 = vld [vmem:[#allocation22 + $0xa8] sm:$0xf]
        %v1602 = vld [vmem:[#allocation22 + $0xac] sm:$0xf]
        %v1607 = vunpack.c.l.b16 %v1599
        %v1608 = vunpack.c.l.b16 %v1600
        %v1609 = vunpack.c.l.b16 %v1601
        %v1610 = vunpack.c.l.b16 %v1602
        %v1611 = vpack.c.b16 %v1608, %v1607
        %v1612 = vpack.c.b16 %v1610, %v1609
        %v1616 = vsel %vm994, %v1598, 0
        %1618 = vmatprep.subr.bf16.mxu0 0
        %1619 = vmatpush1.bf16.msra.mxu0 0
        %1620 = vmatprep.subr.bf16.mxu0 0
        %1621 = vmatpush1.bf16.msra.mxu0 0
        %1622 = vmatprep.subr.bf16.mxu0 0
        %1623 = vmatpush1.bf16.msra.mxu0 0
        %1624 = vmatprep.subr.bf16.mxu0 0
        %1625 = vmatpush1.bf16.msra.mxu0 0
        %1626 = vmatprep.subr.bf16.mxu0 0
        %1627 = vmatpush1.bf16.msra.mxu0 0
        %1628 = vmatprep.subr.bf16.mxu0 0
        %1629 = vmatpush1.bf16.msra.mxu0 0
        %1630 = vmatprep.subr.bf16.mxu0 0
        %1631 = vmatpush1.bf16.msra.mxu0 %v1612
        %1632 = vmatprep.subr.bf16.mxu0 0
        %1633 = vmatpush1.bf16.msra.mxu0 %v1611
        %1634 = vmatprep.subr.bf16.mxu0 0
        %1635 = vmatpush2.bf16.msra.mxu0 0
        %1636 = vmatprep.subr.bf16.mxu0 0
        %1637 = vmatpush2.bf16.msra.mxu0 0
        %1638 = vmatprep.subr.bf16.mxu0 0
        %1639 = vmatpush2.bf16.msra.mxu0 0
        %1640 = vmatprep.subr.bf16.mxu0 0
        %1641 = vmatpush2.bf16.msra.mxu0 0
        %1642 = vmatprep.subr.bf16.mxu0 0
        %1643 = vmatpush2.bf16.msra.mxu0 0
        %1644 = vmatprep.subr.bf16.mxu0 0
        %1645 = vmatpush2.bf16.msra.mxu0 0
        %1646 = vmatprep.subr.bf16.mxu0 0
        %1647 = vmatpush2.bf16.msra.mxu0 0
        %1648 = vmatprep.subr.bf16.mxu0 0
        %1649 = vmatpush2.bf16.msra.mxu0 0
        %1650 = vmatprep.mubr.bf16.mxu0 0
        %1651 = vmatmul.mubr.bf16.gmra.mxu0 %v1616
        %v1652 = vpop.f32.mrf.mxu0
        %v1653 = vadd.f32 0.0, %v1652
        %v1654 = vpop.f32.mrf.mxu0
        %v1655 = vpop.f32.mrf.mxu0
        %v1656 = vpop.f32.mrf.mxu0
        %1657 = vdwg.mxu0
        %v1658 = vadd.f32 %v1596, %v1653
        %v1659 = vld [vmem:[%s839] sm:$0xff]
        %v1660 = vpack.c.bf16 %v1659, %v1659
        %v1661 = vld [vmem:[#allocation22 + $0xb0] sm:$0xf]
        %v1662 = vld [vmem:[#allocation22 + $0xb4] sm:$0xf]
        %v1663 = vld [vmem:[#allocation22 + $0xb8] sm:$0xf]
        %v1664 = vld [vmem:[#allocation22 + $0xbc] sm:$0xf]
        %v1669 = vunpack.c.l.b16 %v1661
        %v1670 = vunpack.c.l.b16 %v1662
        %v1671 = vunpack.c.l.b16 %v1663
        %v1672 = vunpack.c.l.b16 %v1664
        %v1673 = vpack.c.b16 %v1670, %v1669
        %v1674 = vpack.c.b16 %v1672, %v1671
        %v1678 = vsel %vm994, %v1660, 0
        %1680 = vmatprep.subr.bf16.mxu0 0
        %1681 = vmatpush1.bf16.msra.mxu0 0
        %1682 = vmatprep.subr.bf16.mxu0 0
        %1683 = vmatpush1.bf16.msra.mxu0 0
        %1684 = vmatprep.subr.bf16.mxu0 0
        %1685 = vmatpush1.bf16.msra.mxu0 0
        %1686 = vmatprep.subr.bf16.mxu0 0
        %1687 = vmatpush1.bf16.msra.mxu0 0
        %1688 = vmatprep.subr.bf16.mxu0 0
        %1689 = vmatpush1.bf16.msra.mxu0 0
        %1690 = vmatprep.subr.bf16.mxu0 0
        %1691 = vmatpush1.bf16.msra.mxu0 0
        %1692 = vmatprep.subr.bf16.mxu0 0
        %1693 = vmatpush1.bf16.msra.mxu0 %v1674
        %1694 = vmatprep.subr.bf16.mxu0 0
        %1695 = vmatpush1.bf16.msra.mxu0 %v1673
        %1696 = vmatprep.subr.bf16.mxu0 0
        %1697 = vmatpush2.bf16.msra.mxu0 0
        %1698 = vmatprep.subr.bf16.mxu0 0
        %1699 = vmatpush2.bf16.msra.mxu0 0
        %1700 = vmatprep.subr.bf16.mxu0 0
        %1701 = vmatpush2.bf16.msra.mxu0 0
        %1702 = vmatprep.subr.bf16.mxu0 0
        %1703 = vmatpush2.bf16.msra.mxu0 0
        %1704 = vmatprep.subr.bf16.mxu0 0
        %1705 = vmatpush2.bf16.msra.mxu0 0
        %1706 = vmatprep.subr.bf16.mxu0 0
        %1707 = vmatpush2.bf16.msra.mxu0 0
        %1708 = vmatprep.subr.bf16.mxu0 0
        %1709 = vmatpush2.bf16.msra.mxu0 0
        %1710 = vmatprep.subr.bf16.mxu0 0
        %1711 = vmatpush2.bf16.msra.mxu0 0
        %1712 = vmatprep.mubr.bf16.mxu0 0
        %1713 = vmatmul.mubr.bf16.gmra.mxu0 %v1678
        %v1714 = vpop.f32.mrf.mxu0
        %v1715 = vadd.f32 0.0, %v1714
        %v1716 = vpop.f32.mrf.mxu0
        %v1717 = vpop.f32.mrf.mxu0
        %v1718 = vpop.f32.mrf.mxu0
        %1719 = vdwg.mxu0
        %v1720 = vadd.f32 %v1658, %v1715
        %v1721 = vld [vmem:[%s848] sm:$0xff]
        %v1722 = vpack.c.bf16 %v1721, %v1721
        %v1723 = vld [vmem:[#allocation22 + $0xc0] sm:$0xf]
        %v1724 = vld [vmem:[#allocation22 + $0xc4] sm:$0xf]
        %v1725 = vld [vmem:[#allocation22 + $0xc8] sm:$0xf]
        %v1726 = vld [vmem:[#allocation22 + $0xcc] sm:$0xf]
        %v1731 = vunpack.c.l.b16 %v1723
        %v1732 = vunpack.c.l.b16 %v1724
        %v1733 = vunpack.c.l.b16 %v1725
        %v1734 = vunpack.c.l.b16 %v1726
        %v1735 = vpack.c.b16 %v1732, %v1731
        %v1736 = vpack.c.b16 %v1734, %v1733
        %v1740 = vsel %vm994, %v1722, 0
        %1742 = vmatprep.subr.bf16.mxu0 0
        %1743 = vmatpush1.bf16.msra.mxu0 0
        %1744 = vmatprep.subr.bf16.mxu0 0
        %1745 = vmatpush1.bf16.msra.mxu0 0
        %1746 = vmatprep.subr.bf16.mxu0 0
        %1747 = vmatpush1.bf16.msra.mxu0 0
        %1748 = vmatprep.subr.bf16.mxu0 0
        %1749 = vmatpush1.bf16.msra.mxu0 0
        %1750 = vmatprep.subr.bf16.mxu0 0
        %1751 = vmatpush1.bf16.msra.mxu0 0
        %1752 = vmatprep.subr.bf16.mxu0 0
        %1753 = vmatpush1.bf16.msra.mxu0 0
        %1754 = vmatprep.subr.bf16.mxu0 0
        %1755 = vmatpush1.bf16.msra.mxu0 %v1736
        %1756 = vmatprep.subr.bf16.mxu0 0
        %1757 = vmatpush1.bf16.msra.mxu0 %v1735
        %1758 = vmatprep.subr.bf16.mxu0 0
        %1759 = vmatpush2.bf16.msra.mxu0 0
        %1760 = vmatprep.subr.bf16.mxu0 0
        %1761 = vmatpush2.bf16.msra.mxu0 0
        %1762 = vmatprep.subr.bf16.mxu0 0
        %1763 = vmatpush2.bf16.msra.mxu0 0
        %1764 = vmatprep.subr.bf16.mxu0 0
        %1765 = vmatpush2.bf16.msra.mxu0 0
        %1766 = vmatprep.subr.bf16.mxu0 0
        %1767 = vmatpush2.bf16.msra.mxu0 0
        %1768 = vmatprep.subr.bf16.mxu0 0
        %1769 = vmatpush2.bf16.msra.mxu0 0
        %1770 = vmatprep.subr.bf16.mxu0 0
        %1771 = vmatpush2.bf16.msra.mxu0 0
        %1772 = vmatprep.subr.bf16.mxu0 0
        %1773 = vmatpush2.bf16.msra.mxu0 0
        %1774 = vmatprep.mubr.bf16.mxu0 0
        %1775 = vmatmul.mubr.bf16.gmra.mxu0 %v1740
        %v1776 = vpop.f32.mrf.mxu0
        %v1777 = vadd.f32 0.0, %v1776
        %v1778 = vpop.f32.mrf.mxu0
        %v1779 = vpop.f32.mrf.mxu0
        %v1780 = vpop.f32.mrf.mxu0
        %1781 = vdwg.mxu0
        %v1782 = vadd.f32 %v1720, %v1777
        %1783 = vst [vmem:[%s960] sm:$0xff] %v1782
        %s1784 = sand.u32 %s462, 1
        %s1785 = scalar_lea.sflag [#allocation4], %s1784
        %s1786 = sand.u32 %s462, 1
        %s1787 = smul.addr %s1786, 8
        %s1788 = scalar_lea.vmem [#allocation23], %s1787
        // Predicated region
        $region133: #{tpu_custom_call.1} parent=79 // pred_check
          %p1789 = pneg %p472
        $region134: #{tpu_custom_call.1} parent=79 // pred_check_branch
          %1791 = sbr.rel (%p1789) target = $region136
        $region135: #{tpu_custom_call.1} parent=79 // pred_region
          %s1793 = ssub.s32 128, 128
          %1794 = vsyncadd %s1785, %s1793
          %s1795 = sadd.s32 %s54, %s55
          %s1796 = smul.addr %s1795, 128
          %s1797 = scalar_lea.hbm %s15, %s1796
          %s1799 = sshll.u32 %s1788, 4
          %s1800 = int_to_ptr.vmem [resolvable:$true] %s1799
          %1802 = dma.vmem_to_hbm [thread:$0]  %s1800, 128, %s1797, %s1785
        $region136: #{tpu_custom_call.1} parent=79 // pred_fallthru
          _
      $region80: #{tpu_custom_call.1} parent=5 // pred_fallthru
        _
      %p1803 = scmp.le.s32.totalorder 2, %s45
      // Predicated region
      $region137: #{tpu_custom_call.1} parent=5 // pred_check
        %p1804 = pneg %p1803
      $region138: #{tpu_custom_call.1} parent=5 // pred_check_branch
        %1806 = sbr.rel (%p1804) target = $region140
      $region139: #{tpu_custom_call.1} parent=5 // pred_region
        %s1807 = ssub.s32 %s45, 2
        // Predicated region
        $region141: #{tpu_custom_call.1} parent=139 // pred_check
          %p1808 = pneg %p478
        $region142: #{tpu_custom_call.1} parent=139 // pred_check_branch
          %1810 = sbr.rel (%p1808) target = $region144
        $region143: #{tpu_custom_call.1} parent=139 // pred_region
          %s1811 = sand.u32 %s463, 1
          %s1812 = scalar_lea.sflag [#allocation4], %s1811
          %s1813 = sand.u32 %s463, 1
          %s1814 = smul.addr %s1813, 8
          %s1815 = scalar_lea.vmem [#allocation23], %s1814
          %1816 = dma.done %s1812, 128
        $region144: #{tpu_custom_call.1} parent=139 // pred_fallthru
          _
      $region140: #{tpu_custom_call.1} parent=5 // pred_fallthru
        _
    $region6: #{tpu_custom_call.1} parent=1 // loop_footer
      %s49 = sadd.s32 1, %s45
    $region7: #{tpu_custom_call.1} parent=1 // loop_footer_branch
      %44 = sbr.rel target = $region3
    $region8: #{tpu_custom_call.1} parent=1 // loop_exit
      _
    %1817 = vsyncpa [#allocation3], 1
    %s1818 = scalar_lea.sflag [#allocation3], 1
    %1819 = vsyncpa %s1818, 1
    %1820 = vsyncpa [#allocation6], 1
    %s1821 = scalar_lea.sflag [#allocation6], 1
    %1822 = vsyncpa %s1821, 1
    %1823 = vsyncpa [#allocation9], 1
    %s1824 = scalar_lea.sflag [#allocation9], 1
    %1825 = vsyncpa %s1824, 1
    %1826 = vsyncpa [#allocation12], 1
    %s1827 = scalar_lea.sflag [#allocation12], 1
    %1828 = vsyncpa %s1827, 1
    %1829 = vsyncpa [#allocation15], 1
    %s1830 = scalar_lea.sflag [#allocation15], 1
    %1831 = vsyncpa %s1830, 1
    %1832 = vsyncpa [#allocation18], 1
    %s1833 = scalar_lea.sflag [#allocation18], 1
    %1834 = vsyncpa %s1833, 1
    %1835 = vsyncpa [#allocation21], 1
    %s1836 = scalar_lea.sflag [#allocation21], 1
    %1837 = vsyncpa %s1836, 1
    %1838 = vsyncpa [#allocation4], 1
    %s1839 = scalar_lea.sflag [#allocation4], 1
    %1840 = vsyncpa %s1839, 1

</llo_original>
